<compile_context>
chip_gen: v7x
topology: tpu7x:2x2x1
jax: 0.10.0
libtpu: 0.0.40
codegen_flags: <defaults>
</compile_context>

<pallas_src>
import functools
import math

import jax
import jax.numpy as jnp
from jax import lax
from jax.experimental import pallas as pl
from jax.experimental.pallas import tpu as pltpu


_VMEM_LIMIT_BYTES = 48 * 1024 * 1024   # safe on v7x (64 MiB physical); v5e/v6e have 128 MiB
_NT_DIMS = (((1,), (1,)), ((), ()))    # x(M,K) . w(N,K) -> (M,N)  ==  x @ w.T


def _pick_tile(dim, preferred, align):
    """Largest multiple of `align` that divides `dim` and is <= `preferred`;
    falls back to the full dim (full-dim blocks are always legal)."""
    if dim <= preferred or dim % align != 0:
        return dim
    t = (preferred // align) * align
    while t >= align:
        if dim % t == 0:
            return t
        t -= align
    return dim


# ---------------------------------------------------------------------------
# Shared tiled NT matmul kernel: acc += x @ w.T  (w in PyTorch (N, K) layout)
# ---------------------------------------------------------------------------
def _matmul_nt_kernel(x_ref, w_ref, o_ref, acc_ref):
    @pl.when(pl.program_id(2) == 0)
    def _():
        acc_ref[...] = jnp.zeros_like(acc_ref)

    # NT contraction: no transposed copy of w is ever materialized.
    acc_ref[...] += lax.dot_general(
        x_ref[...], w_ref[...], _NT_DIMS, preferred_element_type=jnp.float32)

    @pl.when(pl.program_id(2) == pl.num_programs(2) - 1)
    def _():
        o_ref[...] = acc_ref[...].reshape(o_ref.shape).astype(o_ref.dtype)


def _linear_nt(x, w, *, tm_pref=512, tn_pref=512, tk_pref=512):
    """y = x @ w.T, plain (R, N) output. Used for the final projection."""
    R, K = x.shape
    N, K2 = w.shape
    assert K == K2
    tm = _pick_tile(R, tm_pref, 8)
    tn = _pick_tile(N, tn_pref, 128)
    tk = _pick_tile(K, tk_pref, 128)
    grid = (R // tm, N // tn, K // tk)
    return pl.pallas_call(
        _matmul_nt_kernel,
        out_shape=jax.ShapeDtypeStruct((R, N), x.dtype),
        grid_spec=pltpu.PrefetchScalarGridSpec(
            num_scalar_prefetch=0,
            grid=grid,
            in_specs=[
                pl.BlockSpec((tm, tk), lambda i, j, k: (i, k)),
                pl.BlockSpec((tn, tk), lambda i, j, k: (j, k)),
            ],
            out_specs=pl.BlockSpec((tm, tn), lambda i, j, k: (i, j)),
            scratch_shapes=[pltpu.VMEM((tm, tn), jnp.float32)],
        ),
        compiler_params=pltpu.CompilerParams(
            dimension_semantics=("parallel", "parallel", "arbitrary"),
            vmem_limit_bytes=_VMEM_LIMIT_BYTES,
        ),
    )(x, w)


def _linear_nt_heads(x, w, *, B, L, H, hd, tm_pref=256, tn_pref=512, tk_pref=512):
    """y = x @ w.T written DIRECTLY in head-major (B*H, L, hd) layout.

    The head split is fused into the output BlockSpec (row block -> (batch, row),
    column block -> (head, hd-chunk)); no XLA reshape/transpose afterwards.
    Requires hd % 128 == 0 so the output blocks stay lane-dense.
    """
    R, K = x.shape
    N, K2 = w.shape
    assert K == K2 and R == B * L and N == H * hd
    assert hd % 128 == 0
    tm = _pick_tile(L, tm_pref, 8)      # divides L by construction
    tn = _pick_tile(hd, tn_pref, 128)   # divides hd, multiple of 128
    tk = _pick_tile(K, tk_pref, 128)
    Lb, hdb = L // tm, hd // tn
    grid = (R // tm, N // tn, K // tk)

    def out_map(i, j, k):
        return ((i // Lb) * H + j // hdb, i % Lb, j % hdb)

    return pl.pallas_call(
        _matmul_nt_kernel,
        out_shape=jax.ShapeDtypeStruct((B * H, L, hd), x.dtype),
        grid_spec=pltpu.PrefetchScalarGridSpec(
            num_scalar_prefetch=0,
            grid=grid,
            in_specs=[
                pl.BlockSpec((tm, tk), lambda i, j, k: (i, k)),
                pl.BlockSpec((tn, tk), lambda i, j, k: (j, k)),
            ],
            out_specs=pl.BlockSpec((1, tm, tn), out_map),
            scratch_shapes=[pltpu.VMEM((tm, tn), jnp.float32)],
        ),
        compiler_params=pltpu.CompilerParams(
            dimension_semantics=("parallel", "parallel", "arbitrary"),
            vmem_limit_bytes=_VMEM_LIMIT_BYTES,
        ),
    )(x, w)


# ---------------------------------------------------------------------------
# Flash attention (tiled path): softmax(scale * Q K^T + causal) V per (b, head)
# Output is written directly merged as (B, L, d_model).
# ---------------------------------------------------------------------------
def _flash_kernel(q_ref, k_ref, v_ref, o_ref, m_sc, l_sc, acc_sc,
                  *, scale, causal, blk_q, blk_k):
    qi = pl.program_id(1)
    ki = pl.program_id(2)

    @pl.when(ki == 0)
    def _():
        m_sc[...] = jnp.full_like(m_sc, -jnp.inf)
        l_sc[...] = jnp.zeros_like(l_sc)
        acc_sc[...] = jnp.zeros_like(acc_sc)

    def update():
        # Scale q (blk_q x hd) once instead of s (blk_q x blk_k); keep MXU
        # operands in the input dtype (f32 accumulation via preferred_element_type).
        q = q_ref[0] * scale                                         # (blk_q, hd)
        s = lax.dot_general(q, k_ref[0], _NT_DIMS,
                            preferred_element_type=jnp.float32)      # (blk_q, blk_k)
        if causal:
            row = qi * blk_q + lax.broadcasted_iota(jnp.int32, (blk_q, blk_k), 0)
            col = ki * blk_k + lax.broadcasted_iota(jnp.int32, (blk_q, blk_k), 1)
            # Finite mask value: NaN-safe even for fully-masked rows of a tile.
            s = jnp.where(col > row, -1e30, s)
        m_prev = m_sc[...]
        m_new = jnp.maximum(m_prev, s.max(axis=-1, keepdims=True))
        alpha = jnp.exp(m_prev - m_new)
        p = jnp.exp(s - m_new)
        l_sc[...] = alpha * l_sc[...] + p.sum(axis=-1, keepdims=True)
        acc_sc[...] = alpha * acc_sc[...] + jnp.dot(
            p.astype(v_ref.dtype), v_ref[0], preferred_element_type=jnp.float32)
        m_sc[...] = m_new

    if causal:
        # Fully-masked k-tiles: compute skipped here, DMA skipped via the clamped
        # index_map in _flash_attention.
        @pl.when(ki * blk_k <= qi * blk_q + (blk_q - 1))
        def _():
            update()
    else:
        update()

    @pl.when(ki == pl.num_programs(2) - 1)
    def _():
        o_ref[0] = (acc_sc[...] *
                    pl.reciprocal(l_sc[...], approx=True)).astype(o_ref.dtype)


def _flash_attention(q, k, v, *, scale, causal, B, H,
                     blk_q_pref=256, blk_k_pref=512):
    BH, Sq, hd = q.shape
    _, Sk, _ = k.shape
    assert BH == B * H and hd % 128 == 0
    d_model = H * hd
    blk_q = _pick_tile(Sq, blk_q_pref, 128)
    blk_k = _pick_tile(Sk, blk_k_pref, 128)
    grid = (BH, Sq // blk_q, Sk // blk_k)

    if causal:
        def kv_map(b, i, j):
            # Clamp to the last k-tile intersecting the causal band; repeated
            # block indices make Pallas skip the K/V DMA for masked tiles.
            return (b, jnp.minimum(j, (i * blk_q + blk_q - 1) // blk_k), 0)
    else:
        def kv_map(b, i, j):
            return (b, j, 0)

    def out_map(b, i, j):
        # Head merge fused into the out spec: head h writes d_model block h.
        return (b // H, i, b % H)

    kern = functools.partial(_flash_kernel, scale=scale, causal=causal,
                             blk_q=blk_q, blk_k=blk_k)
    return pl.pallas_call(
        kern,
        out_shape=jax.ShapeDtypeStruct((B, Sq, d_model), q.dtype),
        grid_spec=pltpu.PrefetchScalarGridSpec(
            num_scalar_prefetch=0,
            grid=grid,
            in_specs=[
                pl.BlockSpec((1, blk_q, hd), lambda b, i, j: (b, i, 0)),
                pl.BlockSpec((1, blk_k, hd), kv_map),
                pl.BlockSpec((1, blk_k, hd), kv_map),
            ],
            out_specs=pl.BlockSpec((1, blk_q, hd), out_map),
            scratch_shapes=[
                pltpu.VMEM((blk_q, 1), jnp.float32),    # running max m
                pltpu.VMEM((blk_q, 1), jnp.float32),    # running denom l
                pltpu.VMEM((blk_q, hd), jnp.float32),   # f32 accumulator
            ],
        ),
        compiler_params=pltpu.CompilerParams(
            dimension_semantics=("parallel", "parallel", "arbitrary"),
            vmem_limit_bytes=_VMEM_LIMIT_BYTES,
        ),
    )(q, k, v)


# ---------------------------------------------------------------------------
# Fully fused path (small problems): one pallas_call does everything.
# ---------------------------------------------------------------------------
def _fused_mhca_kernel(xd_ref, xe_ref, wq_ref, wk_ref, wv_ref, wf_ref, o_ref,
                       *, num_heads, scale, causal):
    in_dtype = xd_ref.dtype
    xd = xd_ref[0]                     # (Ld, Din)
    xe = xe_ref[0]                     # (Le, Din)

    # Projections with weights kept in PyTorch (N, K) layout; q pre-scaled once.
    q = (lax.dot_general(xd, wq_ref[...], _NT_DIMS,
                         preferred_element_type=jnp.float32) * scale).astype(in_dtype)
    k = lax.dot_general(xe, wk_ref[...], _NT_DIMS,
                        preferred_element_type=jnp.float32).astype(in_dtype)
    v = lax.dot_general(xe, wv_ref[...], _NT_DIMS,
                        preferred_element_type=jnp.float32).astype(in_dtype)

    Ld, d_model = q.shape
    Le = k.shape[0]
    hd = d_model // num_heads

    if causal:
        row = lax.broadcasted_iota(jnp.int32, (Ld, Le), 0)
        col = lax.broadcasted_iota(jnp.int32, (Ld, Le), 1)
        # Finite (NaN-safe) mask bias instead of -inf.
        mask_bias = jnp.where(col > row, jnp.float32(-1e30), jnp.float32(0.0))

    wf = wf_ref[...]                   # (d_model, d_model)
    out_acc = jnp.zeros((Ld, d_model), jnp.float32)

    # Static unroll over heads (fused path is only used for small head counts).
    for h in range(num_heads):
        sl = slice(h * hd, (h + 1) * hd)
        s = lax.dot_general(q[:, sl], k[:, sl], _NT_DIMS,
                            preferred_element_type=jnp.float32)     # (Ld, Le)
        if causal:
            s = s + mask_bias
        m = jnp.max(s, axis=-1, keepdims=True)
        p = jnp.exp(s - m)
        l = jnp.sum(p, axis=-1, keepdims=True)
        ctx_h = jnp.dot(p.astype(in_dtype), v[:, sl],
                        preferred_element_type=jnp.float32)         # (Ld, hd)
        ctx_h = ctx_h * pl.reciprocal(l, approx=True)
        # Output projection fused per head: out += ctx_h @ Wf[:, h*hd:(h+1)*hd].T
        out_acc += lax.dot_general(ctx_h.astype(in_dtype), wf[:, sl], _NT_DIMS,
                                   preferred_element_type=jnp.float32)

    o_ref[0] = out_acc.astype(o_ref.dtype)


def _fused_forward(output_enc, output_decoder, Wq, Wk, Wv, Wf, *,
                   num_heads, scale, causal):
    B, Ld, Din = output_decoder.shape
    _, Le, _ = output_enc.shape
    d_model = Wq.shape[0]
    kern = functools.partial(_fused_mhca_kernel, num_heads=num_heads,
                             scale=scale, causal=causal)
    return pl.pallas_call(
        kern,
        out_shape=jax.ShapeDtypeStruct((B, Ld, d_model), output_decoder.dtype),
        grid_spec=pltpu.PrefetchScalarGridSpec(
            num_scalar_prefetch=0,
            grid=(B,),   # batch axis parallel -> both v7x TensorCores busy
            in_specs=[
                pl.BlockSpec((1, Ld, Din), lambda b: (b, 0, 0)),
                pl.BlockSpec((1, Le, Din), lambda b: (b, 0, 0)),
                pl.BlockSpec((d_model, Din), lambda b: (0, 0)),
                pl.BlockSpec((d_model, Din), lambda b: (0, 0)),
                pl.BlockSpec((d_model, Din), lambda b: (0, 0)),
                pl.BlockSpec((d_model, d_model), lambda b: (0, 0)),
            ],
            out_specs=pl.BlockSpec((1, Ld, d_model), lambda b: (b, 0, 0)),
        ),
        compiler_params=pltpu.CompilerParams(
            dimension_semantics=("parallel",),
            vmem_limit_bytes=_VMEM_LIMIT_BYTES,
        ),
    )(output_decoder, output_enc, Wq, Wk, Wv, Wf)


def _use_fused_path(B, Ld, Le, Din, d_model, num_heads, itemsize):
    """Whole-problem-per-batch-in-VMEM heuristic (v7x 64 MiB budget)."""
    act = (Ld * Din + Le * Din + Ld * d_model) * itemsize
    wts = (3 * d_model * Din + d_model * d_model) * itemsize
    f32_tmp = (3 * max(Ld, Le) * d_model + Ld * Le + 2 * Ld * d_model) * 4
    need = 2 * act + wts + f32_tmp
    return num_heads <= 16 and need <= 8 * 1024 * 1024


# ---------------------------------------------------------------------------
# Module forward: MultiHeadCrossAttention
# ---------------------------------------------------------------------------
def multi_head_cross_attention(output_enc, output_decoder, weights, *,
                               num_heads, masking=True):
    """weights = (Wq, Wk, Wv, Wf), PyTorch-style (out_features, in_features)."""
    Wq, Wk, Wv, Wf = weights
    B, Ld, Din = output_decoder.shape
    _, Le, _ = output_enc.shape
    d_model = Wq.shape[0]
    assert d_model % num_heads == 0
    hd = d_model // num_heads
    if masking:
        # Torch module applies an (enc_len, enc_len) triu mask to (dec_len,
        # enc_len) scores -> requires dec_len == enc_len.
        assert Ld == Le
    # Torch scales by sqrt(d_model), NOT sqrt(head_dim).
    scale = 1.0 / math.sqrt(d_model)
    # TODO(synk): attention-weight dropout omitted (inference semantics / p=0).

    if _use_fused_path(B, Ld, Le, Din, d_model, num_heads,
                       jnp.dtype(output_decoder.dtype).itemsize):
        return _fused_forward(output_enc, output_decoder, Wq, Wk, Wv, Wf,
                              num_heads=num_heads, scale=scale, causal=masking)

    # --- tiled path (large shapes) -----------------------------------------
    if hd % 128 != 0:
        # TODO(synk): lane-dense head-major fusion needs head_dim % 128 == 0;
        # small-head_dim problems are expected to take the fused path above.
        raise NotImplementedError("tiled path requires head_dim % 128 == 0")

    x_dec = output_decoder.reshape(B * Ld, Din)
    x_enc = output_enc.reshape(B * Le, Din)
    # Projections write directly in head-major (B*H, L, hd) layout.
    q = _linear_nt_heads(x_dec, Wq, B=B, L=Ld, H=num_heads, hd=hd)
    k = _linear_nt_heads(x_enc, Wk, B=B, L=Le, H=num_heads, hd=hd)
    v = _linear_nt_heads(x_enc, Wv, B=B, L=Le, H=num_heads, hd=hd)
    # Flash attention writes its output directly merged as (B, Ld, d_model).
    ctx = _flash_attention(q, k, v, scale=scale, causal=masking, B=B, H=num_heads)
    out = _linear_nt(ctx.reshape(B * Ld, d_model), Wf)
    return out.reshape(B, Ld, d_model)


# ---------------------------------------------------------------------------
# Pure-JAX reference (mirrors the PyTorch forward)
# ---------------------------------------------------------------------------
def _mhca_ref(output_enc, output_decoder, weights, *, num_heads, masking=True):
    Wq, Wk, Wv, Wf = weights
    B, Ld, _ = output_decoder.shape
    _, Le, _ = output_enc.shape
    d_model = Wq.shape[0]
    hd = d_model // num_heads
    q = output_decoder @ Wq.T
    k = output_enc @ Wk.T
    v = output_enc @ Wv.T
    q = q.reshape(B, Ld, num_heads, hd).transpose(0, 2, 1, 3)
    k = k.reshape(B, Le, num_heads, hd).transpose(0, 2, 1, 3)
    v = v.reshape(B, Le, num_heads, hd).transpose(0, 2, 1, 3)
    s = jnp.einsum("bhqd,bhkd->bhqk", q, k)
    if masking:
        mask = jnp.triu(jnp.ones((Le, Le), dtype=bool), k=1)
        s = jnp.where(mask[None, None], -jnp.inf, s)
    w = jax.nn.softmax(s / math.sqrt(d_model), axis=-1)
    ctx = jnp.einsum("bhqk,bhkd->bhqd", w, v)
    ctx = ctx.transpose(0, 2, 1, 3).reshape(B, Ld, d_model)
    return ctx @ Wf.T


if __name__ == "__main__":
    key = jax.random.PRNGKey(0)
    keys = jax.random.split(key, 12)

    def init_w(k_, out_f, in_f):
        return jax.random.normal(k_, (out_f, in_f), dtype=jnp.float32) / math.sqrt(in_f)

    # ---- small demo (fused single-kernel path, f32) ------------------------
    batch, seq, input_dim, d_model, num_heads = 2, 8, 32, 32, 4
    x_enc = jax.random.normal(keys[0], (batch, seq, input_dim), dtype=jnp.float32)
    x_dec = jax.random.normal(keys[1], (batch, seq, input_dim), dtype=jnp.float32)
    w_small = (init_w(keys[2], d_model, input_dim),
               init_w(keys[3], d_model, input_dim),
               init_w(keys[4], d_model, input_dim),
               init_w(keys[5], d_model, d_model))

    fwd = jax.jit(functools.partial(multi_head_cross_attention,
                                    num_heads=num_heads, masking=True))
    out = jax.block_until_ready(fwd(x_enc, x_dec, w_small))
    ref = _mhca_ref(x_enc, x_dec, w_small, num_heads=num_heads, masking=True)
    assert out.shape == (batch, seq, d_model) and out.dtype == jnp.float32
    # f32 matmuls at default precision may use bf16 MXU passes on both sides.
    assert jnp.allclose(out, ref, atol=2e-2, rtol=2e-2), "small/causal mismatch"

    fwd_nc = jax.jit(functools.partial(multi_head_cross_attention,
                                       num_heads=num_heads, masking=False))
    out_nc = jax.block_until_ready(fwd_nc(x_enc, x_dec, w_small))
    ref_nc = _mhca_ref(x_enc, x_dec, w_small, num_heads=num_heads, masking=False)
    assert jnp.allclose(out_nc, ref_nc, atol=2e-2, rtol=2e-2), "small/no-mask mismatch"

    # ---- larger shapes (tiled path, bf16 activations/weights) --------------
    B2, S2, Din2, Dm2, H2 = 2, 1024, 128, 256, 2   # head_dim = 128
    xe2 = jax.random.normal(keys[6], (B2, S2, Din2), dtype=jnp.float32)
    xd2 = jax.random.normal(keys[7], (B2, S2, Din2), dtype=jnp.float32)
    w2_f32 = (init_w(keys[8], Dm2, Din2), init_w(keys[9], Dm2, Din2),
              init_w(keys[10], Dm2, Din2), init_w(keys[11], Dm2, Dm2))
    w2_bf16 = tuple(w.astype(jnp.bfloat16) for w in w2_f32)

    fwd2 = jax.jit(functools.partial(multi_head_cross_attention,
                                     num_heads=H2, masking=True))
    out2 = jax.block_until_ready(
        fwd2(xe2.astype(jnp.bfloat16), xd2.astype(jnp.bfloat16), w2_bf16))
    ref2 = _mhca_ref(xe2, xd2, w2_f32, num_heads=H2, masking=True)
    assert out2.shape == (B2, S2, Dm2) and out2.dtype == jnp.bfloat16
    err = jnp.abs(out2.astype(jnp.float32) - ref2)
    assert float(jnp.mean(err)) < 3e-2, f"tiled path mean err {float(jnp.mean(err))}"
    assert float(jnp.max(err)) < 0.5, f"tiled path max err {float(jnp.max(err))}"

    print("KERNEL_OK")
</pallas_src>

<mosaic_0001>
module attributes {stable_mosaic.version = 11 : i64} {
  func.func @_fused_mhca_kernel(%arg0: i32, %arg1: memref<1x8x32xf32, #tpu.memory_space<vmem>>, %arg2: memref<1x8x32xf32, #tpu.memory_space<vmem>>, %arg3: memref<32x32xf32, #tpu.memory_space<vmem>>, %arg4: memref<32x32xf32, #tpu.memory_space<vmem>>, %arg5: memref<32x32xf32, #tpu.memory_space<vmem>>, %arg6: memref<32x32xf32, #tpu.memory_space<vmem>>, %arg7: memref<1x8x32xf32, #tpu.memory_space<vmem>>) attributes {dimension_semantics = [#tpu.dimension_semantics<parallel>], iteration_bounds = array<i64: 2>, scalar_prefetch = 0 : i64, scratch_operands = 0 : i64, tpu.core_type = #tpu.core_type<tc>, window_params = [{transform_indices = @transform_0, window_bounds = array<i64: 1, 8, 32>}, {transform_indices = @transform_1, window_bounds = array<i64: 1, 8, 32>}, {pipeline_mode = #tpu.pipeline_mode<synchronous>, transform_indices = @transform_2, window_bounds = array<i64: 32, 32>}, {pipeline_mode = #tpu.pipeline_mode<synchronous>, transform_indices = @transform_3, window_bounds = array<i64: 32, 32>}, {pipeline_mode = #tpu.pipeline_mode<synchronous>, transform_indices = @transform_4, window_bounds = array<i64: 32, 32>}, {pipeline_mode = #tpu.pipeline_mode<synchronous>, transform_indices = @transform_5, window_bounds = array<i64: 32, 32>}, {transform_indices = @transform_6, window_bounds = array<i64: 1, 8, 32>}]} {
    %c0 = arith.constant 0 : index
    %c0_0 = arith.constant 0 : index
    %c0_1 = arith.constant 0 : index
    %0 = vector.load %arg1[%c0, %c0_0, %c0_1] : memref<1x8x32xf32, #tpu.memory_space<vmem>>, vector<1x8x32xf32>
    %1 = vector.shape_cast %0 : vector<1x8x32xf32> to vector<8x32xf32>
    %c0_2 = arith.constant 0 : index
    %c0_3 = arith.constant 0 : index
    %c0_4 = arith.constant 0 : index
    %2 = vector.load %arg2[%c0_2, %c0_3, %c0_4] : memref<1x8x32xf32, #tpu.memory_space<vmem>>, vector<1x8x32xf32>
    %3 = vector.shape_cast %2 : vector<1x8x32xf32> to vector<8x32xf32>
    %c0_5 = arith.constant 0 : index
    %c0_6 = arith.constant 0 : index
    %4 = vector.load %arg3[%c0_5, %c0_6] : memref<32x32xf32, #tpu.memory_space<vmem>>, vector<32x32xf32>
    %cst = arith.constant dense<0.000000e+00> : vector<8x32xf32>
    %5 = tpu.matmul %1, %4, %cst {dimension_numbers = #tpu.dot_dimension_numbers<[1], [1], [0], [0], [0, 0, 1, 0], [], []>} : vector<8x32xf32>, vector<32x32xf32>, vector<8x32xf32> -> vector<8x32xf32>
    %cst_7 = arith.constant 0.176776692 : f32
    %6 = vector.broadcast %cst_7 : f32 to vector<8x32xf32>
    %7 = arith.mulf %5, %6 : vector<8x32xf32>
    %c0_8 = arith.constant 0 : index
    %c0_9 = arith.constant 0 : index
    %8 = vector.load %arg4[%c0_8, %c0_9] : memref<32x32xf32, #tpu.memory_space<vmem>>, vector<32x32xf32>
    %cst_10 = arith.constant dense<0.000000e+00> : vector<8x32xf32>
    %9 = tpu.matmul %3, %8, %cst_10 {dimension_numbers = #tpu.dot_dimension_numbers<[1], [1], [0], [0], [0, 0, 1, 0], [], []>} : vector<8x32xf32>, vector<32x32xf32>, vector<8x32xf32> -> vector<8x32xf32>
    %c0_11 = arith.constant 0 : index
    %c0_12 = arith.constant 0 : index
    %10 = vector.load %arg5[%c0_11, %c0_12] : memref<32x32xf32, #tpu.memory_space<vmem>>, vector<32x32xf32>
    %cst_13 = arith.constant dense<0.000000e+00> : vector<8x32xf32>
    %11 = tpu.matmul %3, %10, %cst_13 {dimension_numbers = #tpu.dot_dimension_numbers<[1], [1], [0], [0], [0, 0, 1, 0], [], []>} : vector<8x32xf32>, vector<32x32xf32>, vector<8x32xf32> -> vector<8x32xf32>
    %12 = tpu.iota {dimensions = array<i32: 0>} : vector<8x8xi32>
    %13 = tpu.iota {dimensions = array<i32: 1>} : vector<8x8xi32>
    %14 = arith.cmpi sgt, %13, %12 : vector<8x8xi32>
    %cst_14 = arith.constant -1.000000e+30 : f32
    %cst_15 = arith.constant 0.000000e+00 : f32
    %15 = vector.broadcast %cst_14 : f32 to vector<8x8xf32>
    %16 = vector.broadcast %cst_15 : f32 to vector<8x8xf32>
    %17 = arith.select %14, %15, %16 : vector<8x8xi1>, vector<8x8xf32>
    %c0_16 = arith.constant 0 : index
    %c0_17 = arith.constant 0 : index
    %18 = vector.load %arg6[%c0_16, %c0_17] : memref<32x32xf32, #tpu.memory_space<vmem>>, vector<32x32xf32>
    %cst_18 = arith.constant 0.000000e+00 : f32
    %19 = vector.broadcast %cst_18 : f32 to vector<8x32xf32>
    %20 = vector.extract_strided_slice %7 {offsets = [0, 0], sizes = [8, 8], strides = [1, 1]} : vector<8x32xf32> to vector<8x8xf32>
    %21 = vector.extract_strided_slice %9 {offsets = [0, 0], sizes = [8, 8], strides = [1, 1]} : vector<8x32xf32> to vector<8x8xf32>
    %cst_19 = arith.constant dense<0.000000e+00> : vector<8x8xf32>
    %22 = tpu.matmul %20, %21, %cst_19 {dimension_numbers = #tpu.dot_dimension_numbers<[1], [1], [0], [0], [0, 0, 1, 0], [], []>} : vector<8x8xf32>, vector<8x8xf32>, vector<8x8xf32> -> vector<8x8xf32>
    %23 = arith.addf %22, %17 : vector<8x8xf32>
    %cst_20 = arith.constant dense<0xFF800000> : vector<8xf32>
    %24 = vector.multi_reduction <maximumf>, %23, %cst_20 [1] : vector<8x8xf32> to vector<8xf32>
    %25 = vector.shape_cast %24 : vector<8xf32> to vector<8x1xf32>
    %26 = vector.broadcast %25 : vector<8x1xf32> to vector<8x8xf32>
    %27 = arith.subf %23, %26 : vector<8x8xf32>
    %28 = math.exp %27 : vector<8x8xf32>
    %cst_21 = arith.constant dense<0.000000e+00> : vector<8xf32>
    %29 = vector.multi_reduction <add>, %28, %cst_21 [1] : vector<8x8xf32> to vector<8xf32>
    %30 = vector.shape_cast %29 : vector<8xf32> to vector<8x1xf32>
    %31 = vector.extract_strided_slice %11 {offsets = [0, 0], sizes = [8, 8], strides = [1, 1]} : vector<8x32xf32> to vector<8x8xf32>
    %cst_22 = arith.constant dense<0.000000e+00> : vector<8x8xf32>
    %32 = tpu.matmul %28, %31, %cst_22 {dimension_numbers = #tpu.dot_dimension_numbers<[1], [0], [0], [1], [0, 0, 1, 1], [], []>} : vector<8x8xf32>, vector<8x8xf32>, vector<8x8xf32> -> vector<8x8xf32>
    %33 = tpu.reciprocal %30 {approx = true} : vector<8x1xf32> -> vector<8x1xf32>
    %34 = vector.broadcast %33 : vector<8x1xf32> to vector<8x8xf32>
    %35 = arith.mulf %32, %34 : vector<8x8xf32>
    %36 = vector.extract_strided_slice %18 {offsets = [0, 0], sizes = [32, 8], strides = [1, 1]} : vector<32x32xf32> to vector<32x8xf32>
    %cst_23 = arith.constant dense<0.000000e+00> : vector<8x32xf32>
    %37 = tpu.matmul %35, %36, %cst_23 {dimension_numbers = #tpu.dot_dimension_numbers<[1], [1], [0], [0], [0, 0, 1, 0], [], []>} : vector<8x8xf32>, vector<32x8xf32>, vector<8x32xf32> -> vector<8x32xf32>
    %38 = arith.addf %19, %37 : vector<8x32xf32>
    %39 = vector.extract_strided_slice %7 {offsets = [0, 8], sizes = [8, 8], strides = [1, 1]} : vector<8x32xf32> to vector<8x8xf32>
    %40 = vector.extract_strided_slice %9 {offsets = [0, 8], sizes = [8, 8], strides = [1, 1]} : vector<8x32xf32> to vector<8x8xf32>
    %cst_24 = arith.constant dense<0.000000e+00> : vector<8x8xf32>
    %41 = tpu.matmul %39, %40, %cst_24 {dimension_numbers = #tpu.dot_dimension_numbers<[1], [1], [0], [0], [0, 0, 1, 0], [], []>} : vector<8x8xf32>, vector<8x8xf32>, vector<8x8xf32> -> vector<8x8xf32>
    %42 = arith.addf %41, %17 : vector<8x8xf32>
    %cst_25 = arith.constant dense<0xFF800000> : vector<8xf32>
    %43 = vector.multi_reduction <maximumf>, %42, %cst_25 [1] : vector<8x8xf32> to vector<8xf32>
    %44 = vector.shape_cast %43 : vector<8xf32> to vector<8x1xf32>
    %45 = vector.broadcast %44 : vector<8x1xf32> to vector<8x8xf32>
    %46 = arith.subf %42, %45 : vector<8x8xf32>
    %47 = math.exp %46 : vector<8x8xf32>
    %cst_26 = arith.constant dense<0.000000e+00> : vector<8xf32>
    %48 = vector.multi_reduction <add>, %47, %cst_26 [1] : vector<8x8xf32> to vector<8xf32>
    %49 = vector.shape_cast %48 : vector<8xf32> to vector<8x1xf32>
    %50 = vector.extract_strided_slice %11 {offsets = [0, 8], sizes = [8, 8], strides = [1, 1]} : vector<8x32xf32> to vector<8x8xf32>
    %cst_27 = arith.constant dense<0.000000e+00> : vector<8x8xf32>
    %51 = tpu.matmul %47, %50, %cst_27 {dimension_numbers = #tpu.dot_dimension_numbers<[1], [0], [0], [1], [0, 0, 1, 1], [], []>} : vector<8x8xf32>, vector<8x8xf32>, vector<8x8xf32> -> vector<8x8xf32>
    %52 = tpu.reciprocal %49 {approx = true} : vector<8x1xf32> -> vector<8x1xf32>
    %53 = vector.broadcast %52 : vector<8x1xf32> to vector<8x8xf32>
    %54 = arith.mulf %51, %53 : vector<8x8xf32>
    %55 = vector.extract_strided_slice %18 {offsets = [0, 8], sizes = [32, 8], strides = [1, 1]} : vector<32x32xf32> to vector<32x8xf32>
    %cst_28 = arith.constant dense<0.000000e+00> : vector<8x32xf32>
    %56 = tpu.matmul %54, %55, %cst_28 {dimension_numbers = #tpu.dot_dimension_numbers<[1], [1], [0], [0], [0, 0, 1, 0], [], []>} : vector<8x8xf32>, vector<32x8xf32>, vector<8x32xf32> -> vector<8x32xf32>
    %57 = arith.addf %38, %56 : vector<8x32xf32>
    %58 = vector.extract_strided_slice %7 {offsets = [0, 16], sizes = [8, 8], strides = [1, 1]} : vector<8x32xf32> to vector<8x8xf32>
    %59 = vector.extract_strided_slice %9 {offsets = [0, 16], sizes = [8, 8], strides = [1, 1]} : vector<8x32xf32> to vector<8x8xf32>
    %cst_29 = arith.constant dense<0.000000e+00> : vector<8x8xf32>
    %60 = tpu.matmul %58, %59, %cst_29 {dimension_numbers = #tpu.dot_dimension_numbers<[1], [1], [0], [0], [0, 0, 1, 0], [], []>} : vector<8x8xf32>, vector<8x8xf32>, vector<8x8xf32> -> vector<8x8xf32>
    %61 = arith.addf %60, %17 : vector<8x8xf32>
    %cst_30 = arith.constant dense<0xFF800000> : vector<8xf32>
    %62 = vector.multi_reduction <maximumf>, %61, %cst_30 [1] : vector<8x8xf32> to vector<8xf32>
    %63 = vector.shape_cast %62 : vector<8xf32> to vector<8x1xf32>
    %64 = vector.broadcast %63 : vector<8x1xf32> to vector<8x8xf32>
    %65 = arith.subf %61, %64 : vector<8x8xf32>
    %66 = math.exp %65 : vector<8x8xf32>
    %cst_31 = arith.constant dense<0.000000e+00> : vector<8xf32>
    %67 = vector.multi_reduction <add>, %66, %cst_31 [1] : vector<8x8xf32> to vector<8xf32>
    %68 = vector.shape_cast %67 : vector<8xf32> to vector<8x1xf32>
    %69 = vector.extract_strided_slice %11 {offsets = [0, 16], sizes = [8, 8], strides = [1, 1]} : vector<8x32xf32> to vector<8x8xf32>
    %cst_32 = arith.constant dense<0.000000e+00> : vector<8x8xf32>
    %70 = tpu.matmul %66, %69, %cst_32 {dimension_numbers = #tpu.dot_dimension_numbers<[1], [0], [0], [1], [0, 0, 1, 1], [], []>} : vector<8x8xf32>, vector<8x8xf32>, vector<8x8xf32> -> vector<8x8xf32>
    %71 = tpu.reciprocal %68 {approx = true} : vector<8x1xf32> -> vector<8x1xf32>
    %72 = vector.broadcast %71 : vector<8x1xf32> to vector<8x8xf32>
    %73 = arith.mulf %70, %72 : vector<8x8xf32>
    %74 = vector.extract_strided_slice %18 {offsets = [0, 16], sizes = [32, 8], strides = [1, 1]} : vector<32x32xf32> to vector<32x8xf32>
    %cst_33 = arith.constant dense<0.000000e+00> : vector<8x32xf32>
    %75 = tpu.matmul %73, %74, %cst_33 {dimension_numbers = #tpu.dot_dimension_numbers<[1], [1], [0], [0], [0, 0, 1, 0], [], []>} : vector<8x8xf32>, vector<32x8xf32>, vector<8x32xf32> -> vector<8x32xf32>
    %76 = arith.addf %57, %75 : vector<8x32xf32>
    %77 = vector.extract_strided_slice %7 {offsets = [0, 24], sizes = [8, 8], strides = [1, 1]} : vector<8x32xf32> to vector<8x8xf32>
    %78 = vector.extract_strided_slice %9 {offsets = [0, 24], sizes = [8, 8], strides = [1, 1]} : vector<8x32xf32> to vector<8x8xf32>
    %cst_34 = arith.constant dense<0.000000e+00> : vector<8x8xf32>
    %79 = tpu.matmul %77, %78, %cst_34 {dimension_numbers = #tpu.dot_dimension_numbers<[1], [1], [0], [0], [0, 0, 1, 0], [], []>} : vector<8x8xf32>, vector<8x8xf32>, vector<8x8xf32> -> vector<8x8xf32>
    %80 = arith.addf %79, %17 : vector<8x8xf32>
    %cst_35 = arith.constant dense<0xFF800000> : vector<8xf32>
    %81 = vector.multi_reduction <maximumf>, %80, %cst_35 [1] : vector<8x8xf32> to vector<8xf32>
    %82 = vector.shape_cast %81 : vector<8xf32> to vector<8x1xf32>
    %83 = vector.broadcast %82 : vector<8x1xf32> to vector<8x8xf32>
    %84 = arith.subf %80, %83 : vector<8x8xf32>
    %85 = math.exp %84 : vector<8x8xf32>
    %cst_36 = arith.constant dense<0.000000e+00> : vector<8xf32>
    %86 = vector.multi_reduction <add>, %85, %cst_36 [1] : vector<8x8xf32> to vector<8xf32>
    %87 = vector.shape_cast %86 : vector<8xf32> to vector<8x1xf32>
    %88 = vector.extract_strided_slice %11 {offsets = [0, 24], sizes = [8, 8], strides = [1, 1]} : vector<8x32xf32> to vector<8x8xf32>
    %cst_37 = arith.constant dense<0.000000e+00> : vector<8x8xf32>
    %89 = tpu.matmul %85, %88, %cst_37 {dimension_numbers = #tpu.dot_dimension_numbers<[1], [0], [0], [1], [0, 0, 1, 1], [], []>} : vector<8x8xf32>, vector<8x8xf32>, vector<8x8xf32> -> vector<8x8xf32>
    %90 = tpu.reciprocal %87 {approx = true} : vector<8x1xf32> -> vector<8x1xf32>
    %91 = vector.broadcast %90 : vector<8x1xf32> to vector<8x8xf32>
    %92 = arith.mulf %89, %91 : vector<8x8xf32>
    %93 = vector.extract_strided_slice %18 {offsets = [0, 24], sizes = [32, 8], strides = [1, 1]} : vector<32x32xf32> to vector<32x8xf32>
    %cst_38 = arith.constant dense<0.000000e+00> : vector<8x32xf32>
    %94 = tpu.matmul %92, %93, %cst_38 {dimension_numbers = #tpu.dot_dimension_numbers<[1], [1], [0], [0], [0, 0, 1, 0], [], []>} : vector<8x8xf32>, vector<32x8xf32>, vector<8x32xf32> -> vector<8x32xf32>
    %95 = arith.addf %76, %94 : vector<8x32xf32>
    %c0_39 = arith.constant 0 : index
    %c0_40 = arith.constant 0 : index
    %c0_41 = arith.constant 0 : index
    %96 = vector.load %arg7[%c0_39, %c0_40, %c0_41] : memref<1x8x32xf32, #tpu.memory_space<vmem>>, vector<1x8x32xf32>
    %97 = vector.shape_cast %96 : vector<1x8x32xf32> to vector<8x32xf32>
    %98 = vector.shape_cast %95 : vector<8x32xf32> to vector<1x8x32xf32>
    tpu.vector_store %arg7[%c0_39, %c0_40, %c0_41], %98 {strides = array<i32>} : memref<1x8x32xf32, #tpu.memory_space<vmem>>, vector<1x8x32xf32>,
    return
  }
  func.func @transform_0(%arg0: i32) -> (i32, i32, i32) {
    %c0_i32 = arith.constant 0 : i32
    %c0_i32_0 = arith.constant 0 : i32
    %c0_i32_1 = arith.constant 0 : i32
    return %arg0, %c0_i32, %c0_i32_0 : i32, i32, i32
  }
  func.func @transform_1(%arg0: i32) -> (i32, i32, i32) {
    %c0_i32 = arith.constant 0 : i32
    %c0_i32_0 = arith.constant 0 : i32
    %c0_i32_1 = arith.constant 0 : i32
    return %arg0, %c0_i32, %c0_i32_0 : i32, i32, i32
  }
  func.func @transform_2(%arg0: i32) -> (i32, i32) {
    %c0_i32 = arith.constant 0 : i32
    %c0_i32_0 = arith.constant 0 : i32
    %c0_i32_1 = arith.constant 0 : i32
    return %c0_i32, %c0_i32_0 : i32, i32
  }
  func.func @transform_3(%arg0: i32) -> (i32, i32) {
    %c0_i32 = arith.constant 0 : i32
    %c0_i32_0 = arith.constant 0 : i32
    %c0_i32_1 = arith.constant 0 : i32
    return %c0_i32, %c0_i32_0 : i32, i32
  }
  func.func @transform_4(%arg0: i32) -> (i32, i32) {
    %c0_i32 = arith.constant 0 : i32
    %c0_i32_0 = arith.constant 0 : i32
    %c0_i32_1 = arith.constant 0 : i32
    return %c0_i32, %c0_i32_0 : i32, i32
  }
  func.func @transform_5(%arg0: i32) -> (i32, i32) {
    %c0_i32 = arith.constant 0 : i32
    %c0_i32_0 = arith.constant 0 : i32
    %c0_i32_1 = arith.constant 0 : i32
    return %c0_i32, %c0_i32_0 : i32, i32
  }
  func.func @transform_6(%arg0: i32) -> (i32, i32, i32) {
    %c0_i32 = arith.constant 0 : i32
    %c0_i32_0 = arith.constant 0 : i32
    %c0_i32_1 = arith.constant 0 : i32
    return %arg0, %c0_i32, %c0_i32_0 : i32, i32, i32
  }
}

</mosaic_0001>

<llo_original>
// kernel: multi_head_cross_attention.1
$region0: #{multi_head_cross_attention.1}
  #allocation0 [shape = 'u32[]', space=smem, size = 0x4, offset = 0x4, fixed_abs, tag = 'smem constant byte address 0x4 - core index']
  #allocation1 [shape = 'u32[144,128]{1,0:T(1,128)}', space=vmem, size = 0x12000, scoped, tag = 'internal scratch']
  %s0 = inlined_call_operand.hbm [shape: f32[2,8,32], index: 0, kind: input, shape index: {}]
  %s1 = inlined_call_operand.hbm [shape: f32[2,8,32], index: 1, kind: input, shape index: {}]
  %s2 = inlined_call_operand.hbm [shape: f32[32,32], index: 2, kind: input, shape index: {}]
  %s3 = inlined_call_operand.hbm [shape: f32[32,32], index: 3, kind: input, shape index: {}]
  %s4 = inlined_call_operand.hbm [shape: f32[32,32], index: 4, kind: input, shape index: {}]
  %s5 = inlined_call_operand.hbm [shape: f32[32,32], index: 5, kind: input, shape index: {}]
  %s6 = inlined_call_operand.hbm [shape: f32[2,8,32], index: 6, kind: output, shape index: {}]
  %s7 = sld [smem:[#allocation0]]
  $region81: #{multi_head_cross_attention.1} parent=0
    _
  %s9 = ssub.s32 1, %s7
  %s10 = scalar_select 0, %s9, %s7
  $region1: #{multi_head_cross_attention.1} parent=0
    #allocation2 [shape = 'u8[8192]{0}', space=vmem, size = 0x2000, scoped, tag = 'input window, operand 0']
    #allocation3 [shape = 's32[2]{0}', space=sflag, size = 0x8, scoped, tag = 'scoped memory for multi_head_cross_attention.1']
    #allocation4 [shape = 's32[2]{0}', space=sflag, size = 0x8, scoped, tag = 'scoped memory for multi_head_cross_attention.1']
    #allocation5 [shape = 'u8[8192]{0}', space=vmem, size = 0x2000, scoped, tag = 'input window, operand 1']
    #allocation6 [shape = 's32[2]{0}', space=sflag, size = 0x8, scoped, tag = 'scoped memory for multi_head_cross_attention.1']
    #allocation7 [shape = 'u8[16384]{0}', space=vmem, size = 0x4000, scoped, tag = 'input window, operand 2, single buffered']
    #allocation8 [shape = 'u8[16384]{0}', space=vmem, size = 0x4000, scoped, tag = 'input window, operand 3, single buffered']
    #allocation9 [shape = 's32[1]{0}', space=sflag, size = 0x4, scoped, tag = 'scoped memory for multi_head_cross_attention.1']
    #allocation10 [shape = 'u8[16384]{0}', space=vmem, size = 0x4000, scoped, tag = 'input window, operand 4, single buffered']
    #allocation11 [shape = 'u8[16384]{0}', space=vmem, size = 0x4000, scoped, tag = 'input window, operand 5, single buffered']
    #allocation12 [shape = 's32[1]{0}', space=sflag, size = 0x4, scoped, tag = 'scoped memory for multi_head_cross_attention.1']
    #allocation13 [shape = 'u8[8192]{0}', space=vmem, size = 0x2000, scoped, tag = 'output window, operand 0']
    %11 = vsyncpa [#allocation3], 0
    %s12 = scalar_lea.sflag [#allocation3], 1
    %13 = vsyncpa %s12, 0
    %14 = vsyncpa [#allocation6], 0
    %s15 = scalar_lea.sflag [#allocation6], 1
    %16 = vsyncpa %s15, 0
    %17 = vsyncpa [#allocation9], 0
    %18 = vsyncpa [#allocation12], 0
    %19 = vsyncpa [#allocation4], 0
    %s20 = scalar_lea.sflag [#allocation4], 1
    %21 = vsyncpa %s20, 0
    loop: start=0, step=1, limit=4
    $region2: #{multi_head_cross_attention.1} parent=1 // loop_pre_header
      _
    $region3: #{multi_head_cross_attention.1} parent=1 // loop_header
      %s23 = sphi 0, %s27
      %p24 = scmp.ge.s32.totalorder %s23, 4
      %s33 = sphi 0, %s35
      %s36 = sphi 0, %s33
      %s37 = sphi 0, %s36
      %s53 = sphi 0, %s37
      %s59 = sphi 0, %s61
      %s62 = sphi 0, %s59
      %s63 = sphi 0, %s62
      %s79 = sphi 0, %s63
      %s83 = sphi 0, %s83
      %s85 = sphi 0, %s83
      %s86 = sphi 0, %s85
      %s100 = sphi 0, %s86
      %s104 = sphi 0, %s104
      %s106 = sphi 0, %s104
      %s107 = sphi 0, %s106
      %s121 = sphi 0, %s107
      %s125 = sphi 0, %s125
      %s127 = sphi 0, %s125
      %s128 = sphi 0, %s127
      %s142 = sphi 0, %s128
      %s146 = sphi 0, %s146
      %s148 = sphi 0, %s146
      %s149 = sphi 0, %s148
      %s163 = sphi 0, %s149
      %s169 = sphi 0, %s171
      %s172 = sphi 0, %s169
      %s173 = sphi 0, %s172
      %s189 = sphi 0, %s173
    $region4: #{multi_head_cross_attention.1} parent=1 // loop_header_branch
      %26 = sbr.rel (%p24) target = $region8
    $region5: #{multi_head_cross_attention.1} parent=1 // loop_body
      %s28 = ssub.s32 %s23, 1
      %s29 = ssub.s32 %s23, 2
      %s30 = sadd.s32 %s23, 1
      %s31 = ssub.s32 %s23, %s30
      %p32 = scmp.eq.s32.totalorder %s31, 0
      %s34 = sadd.s32 %s33, 1
      %s35 = scalar_select %p32, %s33, %s34
      %p38 = pneg %p32
      %p39 = scmp.eq.s32.totalorder %s23, 1
      %p40 = por %p38, %p39
      %p41 = scmp.ne.s32.totalorder %s33, %s36
      %p42 = scmp.eq.s32.totalorder %s23, 0
      %p43 = por %p41, %p42
      %p44 = scmp.ne.s32.totalorder %s33, %s36
      %p45 = scmp.eq.s32.totalorder %s28, 1
      %p46 = por %p44, %p45
      %p47 = scmp.ne.s32.totalorder %s36, %s37
      %p48 = scmp.eq.s32.totalorder %s28, 0
      %p49 = por %p47, %p48
      %p50 = scmp.ne.s32.totalorder %s36, %s37
      %p51 = scmp.eq.s32.totalorder %s29, 1
      %p52 = por %p50, %p51
      %p54 = scmp.ne.s32.totalorder %s37, %s53
      %p55 = scmp.eq.s32.totalorder %s29, 0
      %p56 = por %p54, %p55
      %s57 = ssub.s32 %s23, %s30
      %p58 = scmp.eq.s32.totalorder %s57, 0
      %s60 = sadd.s32 %s59, 1
      %s61 = scalar_select %p58, %s59, %s60
      %p64 = pneg %p58
      %p65 = scmp.eq.s32.totalorder %s23, 1
      %p66 = por %p64, %p65
      %p67 = scmp.ne.s32.totalorder %s59, %s62
      %p68 = scmp.eq.s32.totalorder %s23, 0
      %p69 = por %p67, %p68
      %p70 = scmp.ne.s32.totalorder %s59, %s62
      %p71 = scmp.eq.s32.totalorder %s28, 1
      %p72 = por %p70, %p71
      %p73 = scmp.ne.s32.totalorder %s62, %s63
      %p74 = scmp.eq.s32.totalorder %s28, 0
      %p75 = por %p73, %p74
      %p76 = scmp.ne.s32.totalorder %s62, %s63
      %p77 = scmp.eq.s32.totalorder %s29, 1
      %p78 = por %p76, %p77
      %p80 = scmp.ne.s32.totalorder %s63, %s79
      %p81 = scmp.eq.s32.totalorder %s29, 0
      %p82 = por %p80, %p81
      %s84 = sadd.s32 %s83, 1
      %p87 = scmp.eq.s32.totalorder %s23, 1
      %p88 = scmp.ne.s32.totalorder %s83, %s85
      %p89 = scmp.eq.s32.totalorder %s23, 0
      %p90 = por %p88, %p89
      %p91 = scmp.ne.s32.totalorder %s83, %s85
      %p92 = scmp.eq.s32.totalorder %s28, 1
      %p93 = por %p91, %p92
      %p94 = scmp.ne.s32.totalorder %s85, %s86
      %p95 = scmp.eq.s32.totalorder %s28, 0
      %p96 = por %p94, %p95
      %p97 = scmp.ne.s32.totalorder %s85, %s86
      %p98 = scmp.eq.s32.totalorder %s29, 1
      %p99 = por %p97, %p98
      %p101 = scmp.ne.s32.totalorder %s86, %s100
      %p102 = scmp.eq.s32.totalorder %s29, 0
      %p103 = por %p101, %p102
      %s105 = sadd.s32 %s104, 1
      %p108 = scmp.eq.s32.totalorder %s23, 1
      %p109 = scmp.ne.s32.totalorder %s104, %s106
      %p110 = scmp.eq.s32.totalorder %s23, 0
      %p111 = por %p109, %p110
      %p112 = scmp.ne.s32.totalorder %s104, %s106
      %p113 = scmp.eq.s32.totalorder %s28, 1
      %p114 = por %p112, %p113
      %p115 = scmp.ne.s32.totalorder %s106, %s107
      %p116 = scmp.eq.s32.totalorder %s28, 0
      %p117 = por %p115, %p116
      %p118 = scmp.ne.s32.totalorder %s106, %s107
      %p119 = scmp.eq.s32.totalorder %s29, 1
      %p120 = por %p118, %p119
      %p122 = scmp.ne.s32.totalorder %s107, %s121
      %p123 = scmp.eq.s32.totalorder %s29, 0
      %p124 = por %p122, %p123
      %s126 = sadd.s32 %s125, 1
      %p129 = scmp.eq.s32.totalorder %s23, 1
      %p130 = scmp.ne.s32.totalorder %s125, %s127
      %p131 = scmp.eq.s32.totalorder %s23, 0
      %p132 = por %p130, %p131
      %p133 = scmp.ne.s32.totalorder %s125, %s127
      %p134 = scmp.eq.s32.totalorder %s28, 1
      %p135 = por %p133, %p134
      %p136 = scmp.ne.s32.totalorder %s127, %s128
      %p137 = scmp.eq.s32.totalorder %s28, 0
      %p138 = por %p136, %p137
      %p139 = scmp.ne.s32.totalorder %s127, %s128
      %p140 = scmp.eq.s32.totalorder %s29, 1
      %p141 = por %p139, %p140
      %p143 = scmp.ne.s32.totalorder %s128, %s142
      %p144 = scmp.eq.s32.totalorder %s29, 0
      %p145 = por %p143, %p144
      %s147 = sadd.s32 %s146, 1
      %p150 = scmp.eq.s32.totalorder %s23, 1
      %p151 = scmp.ne.s32.totalorder %s146, %s148
      %p152 = scmp.eq.s32.totalorder %s23, 0
      %p153 = por %p151, %p152
      %p154 = scmp.ne.s32.totalorder %s146, %s148
      %p155 = scmp.eq.s32.totalorder %s28, 1
      %p156 = por %p154, %p155
      %p157 = scmp.ne.s32.totalorder %s148, %s149
      %p158 = scmp.eq.s32.totalorder %s28, 0
      %p159 = por %p157, %p158
      %p160 = scmp.ne.s32.totalorder %s148, %s149
      %p161 = scmp.eq.s32.totalorder %s29, 1
      %p162 = por %p160, %p161
      %p164 = scmp.ne.s32.totalorder %s149, %s163
      %p165 = scmp.eq.s32.totalorder %s29, 0
      %p166 = por %p164, %p165
      %s167 = ssub.s32 %s23, %s30
      %p168 = scmp.eq.s32.totalorder %s167, 0
      %s170 = sadd.s32 %s169, 1
      %s171 = scalar_select %p168, %s169, %s170
      %p174 = pneg %p168
      %p175 = scmp.eq.s32.totalorder %s23, 1
      %p176 = por %p174, %p175
      %p177 = scmp.ne.s32.totalorder %s169, %s172
      %p178 = scmp.eq.s32.totalorder %s23, 0
      %p179 = por %p177, %p178
      %p180 = scmp.ne.s32.totalorder %s169, %s172
      %p181 = scmp.eq.s32.totalorder %s28, 1
      %p182 = por %p180, %p181
      %p183 = scmp.ne.s32.totalorder %s172, %s173
      %p184 = scmp.eq.s32.totalorder %s28, 0
      %p185 = por %p183, %p184
      %p186 = scmp.ne.s32.totalorder %s172, %s173
      %p187 = scmp.eq.s32.totalorder %s29, 1
      %p188 = por %p186, %p187
      %p190 = scmp.ne.s32.totalorder %s173, %s189
      %p191 = scmp.eq.s32.totalorder %s29, 0
      %p192 = por %p190, %p191
      %p193 = scmp.le.s32.totalorder 1, %s23
      %p194 = scmp.lt.s32.totalorder %s23, 3
      %p195 = pnand %p193, %p194
      %p196 = pneg %p195
      // Predicated region
      $region9: #{multi_head_cross_attention.1} parent=5 // pred_check
        _
      $region10: #{multi_head_cross_attention.1} parent=5 // pred_check_branch
        %198 = sbr.rel (%p195) target = $region12
      $region11: #{multi_head_cross_attention.1} parent=5 // pred_region
        %s199 = ssub.s32 %s23, 1
        // Predicated region
        $region13: #{multi_head_cross_attention.1} parent=11 // pred_check
          %p200 = pneg %p96
        $region14: #{multi_head_cross_attention.1} parent=11 // pred_check_branch
          %202 = sbr.rel (%p200) target = $region16
        $region15: #{multi_head_cross_attention.1} parent=11 // pred_region
          %s204 = ssub.s32 512, 512
          %205 = vsyncadd [#allocation6], %s204
          %s206 = sshll.u32 [#allocation7], 4
          %s207 = int_to_ptr.vmem [resolvable:$true] %s206
          %212 = dma.hbm_to_vmem [thread:$0]  %s2, 512, %s207, [#allocation6], 128, 128, 8
        $region16: #{multi_head_cross_attention.1} parent=11 // pred_fallthru
          _
        // Predicated region
        $region17: #{multi_head_cross_attention.1} parent=11 // pred_check
          %p213 = pneg %p117
        $region18: #{multi_head_cross_attention.1} parent=11 // pred_check_branch
          %215 = sbr.rel (%p213) target = $region20
        $region19: #{multi_head_cross_attention.1} parent=11 // pred_region
          %s217 = ssub.s32 512, 512
          %218 = vsyncadd [#allocation9], %s217
          %s219 = sshll.u32 [#allocation8], 4
          %s220 = int_to_ptr.vmem [resolvable:$true] %s219
          %225 = dma.hbm_to_vmem [thread:$0]  %s3, 512, %s220, [#allocation9], 128, 128, 8
        $region20: #{multi_head_cross_attention.1} parent=11 // pred_fallthru
          _
        // Predicated region
        $region21: #{multi_head_cross_attention.1} parent=11 // pred_check
          %p226 = pneg %p138
        $region22: #{multi_head_cross_attention.1} parent=11 // pred_check_branch
          %228 = sbr.rel (%p226) target = $region24
        $region23: #{multi_head_cross_attention.1} parent=11 // pred_region
          %s230 = ssub.s32 512, 512
          %231 = vsyncadd [#allocation9], %s230
          %s232 = sshll.u32 [#allocation10], 4
          %s233 = int_to_ptr.vmem [resolvable:$true] %s232
          %238 = dma.hbm_to_vmem [thread:$0]  %s4, 512, %s233, [#allocation9], 128, 128, 8
        $region24: #{multi_head_cross_attention.1} parent=11 // pred_fallthru
          _
        // Predicated region
        $region25: #{multi_head_cross_attention.1} parent=11 // pred_check
          %p239 = pneg %p159
        $region26: #{multi_head_cross_attention.1} parent=11 // pred_check_branch
          %241 = sbr.rel (%p239) target = $region28
        $region27: #{multi_head_cross_attention.1} parent=11 // pred_region
          %s243 = ssub.s32 512, 512
          %244 = vsyncadd [#allocation12], %s243
          %s245 = sshll.u32 [#allocation11], 4
          %s246 = int_to_ptr.vmem [resolvable:$true] %s245
          %251 = dma.hbm_to_vmem [thread:$0]  %s5, 512, %s246, [#allocation12], 128, 128, 8
        $region28: #{multi_head_cross_attention.1} parent=11 // pred_fallthru
          _
      $region12: #{multi_head_cross_attention.1} parent=5 // pred_fallthru
        _
      %p252 = scmp.lt.s32.totalorder %s23, 2
      // Predicated region
      $region29: #{multi_head_cross_attention.1} parent=5 // pred_check
        %p253 = pneg %p252
      $region30: #{multi_head_cross_attention.1} parent=5 // pred_check_branch
        %255 = sbr.rel (%p253) target = $region32
      $region31: #{multi_head_cross_attention.1} parent=5 // pred_region
        // Predicated region
        $region33: #{multi_head_cross_attention.1} parent=31 // pred_check
          %p256 = pneg %p43
        $region34: #{multi_head_cross_attention.1} parent=31 // pred_check_branch
          %258 = sbr.rel (%p256) target = $region36
        $region35: #{multi_head_cross_attention.1} parent=31 // pred_region
          %s259 = sand.u32 %s33, 1
          %s260 = scalar_lea.sflag [#allocation3], %s259
          %s261 = sand.u32 %s33, 1
          %s262 = smul.addr %s261, 8
          %s263 = scalar_lea.vmem [#allocation2], %s262
          %s265 = ssub.s32 128, 128
          %266 = vsyncadd %s260, %s265
          %s267 = smul.addr %s23, 128
          %s268 = scalar_lea.hbm %s0, %s267
          %s270 = sshll.u32 %s263, 4
          %s271 = int_to_ptr.vmem [resolvable:$true] %s270
          %273 = dma.hbm_to_vmem [thread:$0]  %s268, 128, %s271, %s260
        $region36: #{multi_head_cross_attention.1} parent=31 // pred_fallthru
          _
        // Predicated region
        $region37: #{multi_head_cross_attention.1} parent=31 // pred_check
          %p274 = pneg %p69
        $region38: #{multi_head_cross_attention.1} parent=31 // pred_check_branch
          %276 = sbr.rel (%p274) target = $region40
        $region39: #{multi_head_cross_attention.1} parent=31 // pred_region
          %s277 = sand.u32 %s23, 1
          %s278 = scalar_lea.sflag [#allocation6], %s277
          %s279 = sand.u32 %s59, 1
          %s280 = smul.addr %s279, 8
          %s281 = scalar_lea.vmem [#allocation5], %s280
          %s283 = ssub.s32 128, 128
          %284 = vsyncadd %s278, %s283
          %s285 = smul.addr %s23, 128
          %s286 = scalar_lea.hbm %s1, %s285
          %s288 = sshll.u32 %s281, 4
          %s289 = int_to_ptr.vmem [resolvable:$true] %s288
          %291 = dma.hbm_to_vmem [thread:$0]  %s286, 128, %s289, %s278
        $region40: #{multi_head_cross_attention.1} parent=31 // pred_fallthru
          _
      $region32: #{multi_head_cross_attention.1} parent=5 // pred_fallthru
        _
      %p292 = scmp.le.s32.totalorder 1, %s23
      %p293 = scmp.lt.s32.totalorder %s23, 3
      %p294 = pnand %p292, %p293
      %p295 = pneg %p294
      // Predicated region
      $region41: #{multi_head_cross_attention.1} parent=5 // pred_check
        _
      $region42: #{multi_head_cross_attention.1} parent=5 // pred_check_branch
        %297 = sbr.rel (%p294) target = $region44
      $region43: #{multi_head_cross_attention.1} parent=5 // pred_region
        %s298 = ssub.s32 %s23, 1
        %s299 = sand.u32 %s36, 1
        %s300 = scalar_lea.sflag [#allocation3], %s299
        %s301 = sand.u32 %s36, 1
        %s302 = smul.addr %s301, 8
        %s303 = scalar_lea.vmem [#allocation2], %s302
        // Predicated region
        $region45: #{multi_head_cross_attention.1} parent=43 // pred_check
          %p304 = pneg %p49
        $region46: #{multi_head_cross_attention.1} parent=43 // pred_check_branch
          %306 = sbr.rel (%p304) target = $region48
        $region47: #{multi_head_cross_attention.1} parent=43 // pred_region
          %307 = dma.done %s300, 128
        $region48: #{multi_head_cross_attention.1} parent=43 // pred_fallthru
          _
        %s308 = sand.u32 %s28, 1
        %s309 = scalar_lea.sflag [#allocation6], %s308
        %s310 = sand.u32 %s62, 1
        %s311 = smul.addr %s310, 8
        %s312 = scalar_lea.vmem [#allocation5], %s311
        // Predicated region
        $region49: #{multi_head_cross_attention.1} parent=43 // pred_check
          %p313 = pneg %p75
        $region50: #{multi_head_cross_attention.1} parent=43 // pred_check_branch
          %315 = sbr.rel (%p313) target = $region52
        $region51: #{multi_head_cross_attention.1} parent=43 // pred_region
          %316 = dma.done %s309, 128
        $region52: #{multi_head_cross_attention.1} parent=43 // pred_fallthru
          _
        // Predicated region
        $region53: #{multi_head_cross_attention.1} parent=43 // pred_check
          %p317 = pneg %p96
        $region54: #{multi_head_cross_attention.1} parent=43 // pred_check_branch
          %319 = sbr.rel (%p317) target = $region56
        $region55: #{multi_head_cross_attention.1} parent=43 // pred_region
          %320 = dma.done [#allocation6], 512
        $region56: #{multi_head_cross_attention.1} parent=43 // pred_fallthru
          _
        // Predicated region
        $region57: #{multi_head_cross_attention.1} parent=43 // pred_check
          %p321 = pneg %p117
        $region58: #{multi_head_cross_attention.1} parent=43 // pred_check_branch
          %323 = sbr.rel (%p321) target = $region60
        $region59: #{multi_head_cross_attention.1} parent=43 // pred_region
          %324 = dma.done [#allocation9], 512
        $region60: #{multi_head_cross_attention.1} parent=43 // pred_fallthru
          _
        // Predicated region
        $region61: #{multi_head_cross_attention.1} parent=43 // pred_check
          %p325 = pneg %p138
        $region62: #{multi_head_cross_attention.1} parent=43 // pred_check_branch
          %327 = sbr.rel (%p325) target = $region64
        $region63: #{multi_head_cross_attention.1} parent=43 // pred_region
          %328 = dma.done [#allocation9], 512
        $region64: #{multi_head_cross_attention.1} parent=43 // pred_fallthru
          _
        // Predicated region
        $region65: #{multi_head_cross_attention.1} parent=43 // pred_check
          %p329 = pneg %p159
        $region66: #{multi_head_cross_attention.1} parent=43 // pred_check_branch
          %331 = sbr.rel (%p329) target = $region68
        $region67: #{multi_head_cross_attention.1} parent=43 // pred_region
          %332 = dma.done [#allocation12], 512
        $region68: #{multi_head_cross_attention.1} parent=43 // pred_fallthru
          _
        %s333 = sand.u32 %s36, 1
        %s334 = scalar_lea.sflag [#allocation3], %s333
        %s335 = sand.u32 %s36, 1
        %s336 = smul.addr %s335, 8
        %s337 = scalar_lea.vmem [#allocation2], %s336
        %p338 = pneg %p49
        %p339 = pneg %p46
        %s340 = sand.u32 %s28, 1
        %s341 = scalar_lea.sflag [#allocation6], %s340
        %s342 = sand.u32 %s62, 1
        %s343 = smul.addr %s342, 8
        %s344 = scalar_lea.vmem [#allocation5], %s343
        %p345 = pneg %p75
        %p346 = pneg %p72
        %p347 = pneg %p96
        %p348 = pneg %p93
        %p349 = pneg %p117
        %p350 = pneg %p114
        %p351 = pneg %p138
        %p352 = pneg %p135
        %p353 = pneg %p159
        %p354 = pneg %p156
        %p355 = pneg %p185
        %p356 = pneg %p182
        %s357 = sand.u32 %s172, 1
        %s358 = scalar_lea.sflag [#allocation4], %s357
        %s359 = sand.u32 %s172, 1
        %s360 = smul.addr %s359, 8
        %s361 = scalar_lea.vmem [#allocation13], %s360
        %v362 = vld [vmem:[%s303] sm:$0xff]
        %v363 = vld [vmem:[%s312] sm:$0xff]
        %v364 = vld [vmem:[#allocation7] sm:$0xff]
        %v365 = vld [vmem:[#allocation7 + $0x8] sm:$0xff]
        %v366 = vld [vmem:[#allocation7 + $0x10] sm:$0xff]
        %v367 = vld [vmem:[#allocation7 + $0x18] sm:$0xff]
        %vm368 = vcmask 261120
        %v370 = vsel %vm368, %v362, 0
        %v373 = vsel %vm368, %v364, 0
        %v376 = vsel %vm368, %v365, 0
        %v379 = vsel %vm368, %v366, 0
        %v382 = vsel %vm368, %v367, 0
        %384 = vmatprep.subr.mxu0 0.0
        %385 = vmatpush1.xpose.msra.mxu0 %v373
        %386 = vmatprep.subr.mxu0 0.0
        %387 = vmatpush1.xpose.msra.mxu0 %v376
        %388 = vmatprep.subr.mxu0 0.0
        %389 = vmatpush1.xpose.msra.mxu0 %v379
        %390 = vmatprep.subr.mxu0 0.0
        %391 = vmatpush1.xpose.msra.mxu0 %v382
        %392 = vmatprep.subr.mxu0 0.0
        %393 = vmatpush1.xpose.msra.mxu0 0.0
        %394 = vmatprep.subr.mxu0 0.0
        %395 = vmatpush1.xpose.msra.mxu0 0.0
        %396 = vmatprep.subr.mxu0 0.0
        %397 = vmatpush1.xpose.msra.mxu0 0.0
        %398 = vmatprep.subr.mxu0 0.0
        %399 = vmatpush1.xpose.msra.mxu0 0.0
        %400 = vmatprep.subr.mxu0 0.0
        %401 = vmatpush1.xpose.msra.mxu0 0.0
        %402 = vmatprep.subr.mxu0 0.0
        %403 = vmatpush1.xpose.msra.mxu0 0.0
        %404 = vmatprep.subr.mxu0 0.0
        %405 = vmatpush1.xpose.msra.mxu0 0.0
        %406 = vmatprep.subr.mxu0 0.0
        %407 = vmatpush1.xpose.msra.mxu0 0.0
        %408 = vmatprep.subr.mxu0 0.0
        %409 = vmatpush1.xpose.msra.mxu0 0.0
        %410 = vmatprep.subr.mxu0 0.0
        %411 = vmatpush1.xpose.msra.mxu0 0.0
        %412 = vmatprep.subr.mxu0 0.0
        %413 = vmatpush1.xpose.msra.mxu0 0.0
        %414 = vmatprep.subr.mxu0 0.0
        %415 = vmatpush1.xpose.msra.mxu0 0.0
        %416 = vmatprep.subr.mxu0 0.0
        %417 = vmatpush1.xpose.msra.mxu0 0.0
        %418 = vmatprep.subr.mxu0 0.0
        %419 = vmatpush1.xpose.msra.mxu0 0.0
        %420 = vmatprep.subr.mxu0 0.0
        %421 = vmatpush1.xpose.msra.mxu0 0.0
        %422 = vmatprep.subr.mxu0 0.0
        %423 = vmatpush1.xpose.msra.mxu0 0.0
        %424 = vmatprep.subr.mxu0 0.0
        %425 = vmatpush1.xpose.msra.mxu0 0.0
        %426 = vmatprep.subr.mxu0 0.0
        %427 = vmatpush1.xpose.msra.mxu0 0.0
        %428 = vmatprep.subr.mxu0 0.0
        %429 = vmatpush1.xpose.msra.mxu0 0.0
        %430 = vmatprep.subr.mxu0 0.0
        %431 = vmatpush1.xpose.msra.mxu0 0.0
        %432 = vmatprep.subr.mxu0 0.0
        %433 = vmatpush1.xpose.msra.mxu0 0.0
        %434 = vmatprep.subr.mxu0 0.0
        %435 = vmatpush1.xpose.msra.mxu0 0.0
        %436 = vmatprep.subr.mxu0 0.0
        %437 = vmatpush1.xpose.msra.mxu0 0.0
        %438 = vmatprep.subr.mxu0 0.0
        %439 = vmatpush1.xpose.msra.mxu0 0.0
        %440 = vmatprep.subr.mxu0 0.0
        %441 = vmatpush1.xpose.msra.mxu0 0.0
        %442 = vmatprep.subr.mxu0 0.0
        %443 = vmatpush1.xpose.msra.mxu0 0.0
        %444 = vmatprep.subr.mxu0 0.0
        %445 = vmatpush1.xpose.msra.mxu0 0.0
        %446 = vmatprep.subr.mxu0 0.0
        %447 = vmatpush1.xpose.msra.mxu0 0.0
        %448 = vmatprep.mubr.f32.mxu0 0.0
        %449 = vmatmul.mubr.f32.gmra.mrb[0].mxu0 %v370
        %v450 = vpop.f32.mrb[0].mxu0
        %v451 = vadd.f32 0.0, %v450
        %v452 = vpop.f32.mrb[0].mxu0
        %453 = vdwg.mxu0
        %v454 = vmul.f32 %v451, 0.17677669
        %v455 = vld [vmem:[#allocation8] sm:$0xff]
        %v456 = vld [vmem:[#allocation8 + $0x8] sm:$0xff]
        %v457 = vld [vmem:[#allocation8 + $0x10] sm:$0xff]
        %v458 = vld [vmem:[#allocation8 + $0x18] sm:$0xff]
        %v460 = vsel %vm368, %v363, 0
        %v463 = vsel %vm368, %v455, 0
        %v466 = vsel %vm368, %v456, 0
        %v469 = vsel %vm368, %v457, 0
        %v472 = vsel %vm368, %v458, 0
        %474 = vmatprep.subr.mxu0 0.0
        %475 = vmatpush1.xpose.msra.mxu0 %v463
        %476 = vmatprep.subr.mxu0 0.0
        %477 = vmatpush1.xpose.msra.mxu0 %v466
        %478 = vmatprep.subr.mxu0 0.0
        %479 = vmatpush1.xpose.msra.mxu0 %v469
        %480 = vmatprep.subr.mxu0 0.0
        %481 = vmatpush1.xpose.msra.mxu0 %v472
        %482 = vmatprep.subr.mxu0 0.0
        %483 = vmatpush1.xpose.msra.mxu0 0.0
        %484 = vmatprep.subr.mxu0 0.0
        %485 = vmatpush1.xpose.msra.mxu0 0.0
        %486 = vmatprep.subr.mxu0 0.0
        %487 = vmatpush1.xpose.msra.mxu0 0.0
        %488 = vmatprep.subr.mxu0 0.0
        %489 = vmatpush1.xpose.msra.mxu0 0.0
        %490 = vmatprep.subr.mxu0 0.0
        %491 = vmatpush1.xpose.msra.mxu0 0.0
        %492 = vmatprep.subr.mxu0 0.0
        %493 = vmatpush1.xpose.msra.mxu0 0.0
        %494 = vmatprep.subr.mxu0 0.0
        %495 = vmatpush1.xpose.msra.mxu0 0.0
        %496 = vmatprep.subr.mxu0 0.0
        %497 = vmatpush1.xpose.msra.mxu0 0.0
        %498 = vmatprep.subr.mxu0 0.0
        %499 = vmatpush1.xpose.msra.mxu0 0.0
        %500 = vmatprep.subr.mxu0 0.0
        %501 = vmatpush1.xpose.msra.mxu0 0.0
        %502 = vmatprep.subr.mxu0 0.0
        %503 = vmatpush1.xpose.msra.mxu0 0.0
        %504 = vmatprep.subr.mxu0 0.0
        %505 = vmatpush1.xpose.msra.mxu0 0.0
        %506 = vmatprep.subr.mxu0 0.0
        %507 = vmatpush1.xpose.msra.mxu0 0.0
        %508 = vmatprep.subr.mxu0 0.0
        %509 = vmatpush1.xpose.msra.mxu0 0.0
        %510 = vmatprep.subr.mxu0 0.0
        %511 = vmatpush1.xpose.msra.mxu0 0.0
        %512 = vmatprep.subr.mxu0 0.0
        %513 = vmatpush1.xpose.msra.mxu0 0.0
        %514 = vmatprep.subr.mxu0 0.0
        %515 = vmatpush1.xpose.msra.mxu0 0.0
        %516 = vmatprep.subr.mxu0 0.0
        %517 = vmatpush1.xpose.msra.mxu0 0.0
        %518 = vmatprep.subr.mxu0 0.0
        %519 = vmatpush1.xpose.msra.mxu0 0.0
        %520 = vmatprep.subr.mxu0 0.0
        %521 = vmatpush1.xpose.msra.mxu0 0.0
        %522 = vmatprep.subr.mxu0 0.0
        %523 = vmatpush1.xpose.msra.mxu0 0.0
        %524 = vmatprep.subr.mxu0 0.0
        %525 = vmatpush1.xpose.msra.mxu0 0.0
        %526 = vmatprep.subr.mxu0 0.0
        %527 = vmatpush1.xpose.msra.mxu0 0.0
        %528 = vmatprep.subr.mxu0 0.0
        %529 = vmatpush1.xpose.msra.mxu0 0.0
        %530 = vmatprep.subr.mxu0 0.0
        %531 = vmatpush1.xpose.msra.mxu0 0.0
        %532 = vmatprep.subr.mxu0 0.0
        %533 = vmatpush1.xpose.msra.mxu0 0.0
        %534 = vmatprep.subr.mxu0 0.0
        %535 = vmatpush1.xpose.msra.mxu0 0.0
        %536 = vmatprep.subr.mxu0 0.0
        %537 = vmatpush1.xpose.msra.mxu0 0.0
        %538 = vmatprep.mubr.f32.mxu0 0.0
        %539 = vmatmul.mubr.f32.gmra.mrb[0].mxu0 %v460
        %v540 = vpop.f32.mrb[0].mxu0
        %v541 = vadd.f32 0.0, %v540
        %v542 = vpop.f32.mrb[0].mxu0
        %543 = vdwg.mxu0
        %v544 = vld [vmem:[#allocation10] sm:$0xff]
        %v545 = vld [vmem:[#allocation10 + $0x8] sm:$0xff]
        %v546 = vld [vmem:[#allocation10 + $0x10] sm:$0xff]
        %v547 = vld [vmem:[#allocation10 + $0x18] sm:$0xff]
        %v549 = vsel %vm368, %v544, 0
        %v552 = vsel %vm368, %v545, 0
        %v555 = vsel %vm368, %v546, 0
        %v558 = vsel %vm368, %v547, 0
        %560 = vmatprep.subr.mxu0 0.0
        %561 = vmatpush1.xpose.msra.mxu0 %v549
        %562 = vmatprep.subr.mxu0 0.0
        %563 = vmatpush1.xpose.msra.mxu0 %v552
        %564 = vmatprep.subr.mxu0 0.0
        %565 = vmatpush1.xpose.msra.mxu0 %v555
        %566 = vmatprep.subr.mxu0 0.0
        %567 = vmatpush1.xpose.msra.mxu0 %v558
        %568 = vmatprep.subr.mxu0 0.0
        %569 = vmatpush1.xpose.msra.mxu0 0.0
        %570 = vmatprep.subr.mxu0 0.0
        %571 = vmatpush1.xpose.msra.mxu0 0.0
        %572 = vmatprep.subr.mxu0 0.0
        %573 = vmatpush1.xpose.msra.mxu0 0.0
        %574 = vmatprep.subr.mxu0 0.0
        %575 = vmatpush1.xpose.msra.mxu0 0.0
        %576 = vmatprep.subr.mxu0 0.0
        %577 = vmatpush1.xpose.msra.mxu0 0.0
        %578 = vmatprep.subr.mxu0 0.0
        %579 = vmatpush1.xpose.msra.mxu0 0.0
        %580 = vmatprep.subr.mxu0 0.0
        %581 = vmatpush1.xpose.msra.mxu0 0.0
        %582 = vmatprep.subr.mxu0 0.0
        %583 = vmatpush1.xpose.msra.mxu0 0.0
        %584 = vmatprep.subr.mxu0 0.0
        %585 = vmatpush1.xpose.msra.mxu0 0.0
        %586 = vmatprep.subr.mxu0 0.0
        %587 = vmatpush1.xpose.msra.mxu0 0.0
        %588 = vmatprep.subr.mxu0 0.0
        %589 = vmatpush1.xpose.msra.mxu0 0.0
        %590 = vmatprep.subr.mxu0 0.0
        %591 = vmatpush1.xpose.msra.mxu0 0.0
        %592 = vmatprep.subr.mxu0 0.0
        %593 = vmatpush1.xpose.msra.mxu0 0.0
        %594 = vmatprep.subr.mxu0 0.0
        %595 = vmatpush1.xpose.msra.mxu0 0.0
        %596 = vmatprep.subr.mxu0 0.0
        %597 = vmatpush1.xpose.msra.mxu0 0.0
        %598 = vmatprep.subr.mxu0 0.0
        %599 = vmatpush1.xpose.msra.mxu0 0.0
        %600 = vmatprep.subr.mxu0 0.0
        %601 = vmatpush1.xpose.msra.mxu0 0.0
        %602 = vmatprep.subr.mxu0 0.0
        %603 = vmatpush1.xpose.msra.mxu0 0.0
        %604 = vmatprep.subr.mxu0 0.0
        %605 = vmatpush1.xpose.msra.mxu0 0.0
        %606 = vmatprep.subr.mxu0 0.0
        %607 = vmatpush1.xpose.msra.mxu0 0.0
        %608 = vmatprep.subr.mxu0 0.0
        %609 = vmatpush1.xpose.msra.mxu0 0.0
        %610 = vmatprep.subr.mxu0 0.0
        %611 = vmatpush1.xpose.msra.mxu0 0.0
        %612 = vmatprep.subr.mxu0 0.0
        %613 = vmatpush1.xpose.msra.mxu0 0.0
        %614 = vmatprep.subr.mxu0 0.0
        %615 = vmatpush1.xpose.msra.mxu0 0.0
        %616 = vmatprep.subr.mxu0 0.0
        %617 = vmatpush1.xpose.msra.mxu0 0.0
        %618 = vmatprep.subr.mxu0 0.0
        %619 = vmatpush1.xpose.msra.mxu0 0.0
        %620 = vmatprep.subr.mxu0 0.0
        %621 = vmatpush1.xpose.msra.mxu0 0.0
        %622 = vmatprep.subr.mxu0 0.0
        %623 = vmatpush1.xpose.msra.mxu0 0.0
        %624 = vmatprep.mubr.f32.mxu0 0.0
        %625 = vmatmul.mubr.f32.gmra.mrb[0].mxu0 %v460
        %v626 = vpop.f32.mrb[0].mxu0
        %v627 = vadd.f32 0.0, %v626
        %v628 = vpop.f32.mrb[0].mxu0
        %629 = vdwg.mxu0
        %v630 = vlaneseq
        %v631 = vshrl.u32 %v630, 7
        %v632 = vlaneseq
        %v633 = vand.u32 %v632, 127
        %vm634 = vcmp.gt.s32.totalorder %v633, %v631
        %v635 = vsel %vm634, -1e+30, 0.0
        %v636 = vld [vmem:[#allocation11] sm:$0xff]
        %v637 = vld [vmem:[#allocation11 + $0x8] sm:$0xff]
        %v638 = vld [vmem:[#allocation11 + $0x10] sm:$0xff]
        %v639 = vld [vmem:[#allocation11 + $0x18] sm:$0xff]
        %vm640 = vcmask 64512
        %v642 = vsel %vm640, %v454, 0
        %v645 = vsel %vm640, %v541, 0
        %647 = vmatprep.subr.mxu0 0.0
        %648 = vmatpush1.xpose.msra.mxu0 %v645
        %649 = vmatprep.subr.mxu0 0.0
        %650 = vmatpush1.xpose.msra.mxu0 0.0
        %651 = vmatprep.subr.mxu0 0.0
        %652 = vmatpush1.xpose.msra.mxu0 0.0
        %653 = vmatprep.subr.mxu0 0.0
        %654 = vmatpush1.xpose.msra.mxu0 0.0
        %655 = vmatprep.subr.mxu0 0.0
        %656 = vmatpush1.xpose.msra.mxu0 0.0
        %657 = vmatprep.subr.mxu0 0.0
        %658 = vmatpush1.xpose.msra.mxu0 0.0
        %659 = vmatprep.subr.mxu0 0.0
        %660 = vmatpush1.xpose.msra.mxu0 0.0
        %661 = vmatprep.subr.mxu0 0.0
        %662 = vmatpush1.xpose.msra.mxu0 0.0
        %663 = vmatprep.subr.mxu0 0.0
        %664 = vmatpush1.xpose.msra.mxu0 0.0
        %665 = vmatprep.subr.mxu0 0.0
        %666 = vmatpush1.xpose.msra.mxu0 0.0
        %667 = vmatprep.subr.mxu0 0.0
        %668 = vmatpush1.xpose.msra.mxu0 0.0
        %669 = vmatprep.subr.mxu0 0.0
        %670 = vmatpush1.xpose.msra.mxu0 0.0
        %671 = vmatprep.subr.mxu0 0.0
        %672 = vmatpush1.xpose.msra.mxu0 0.0
        %673 = vmatprep.subr.mxu0 0.0
        %674 = vmatpush1.xpose.msra.mxu0 0.0
        %675 = vmatprep.subr.mxu0 0.0
        %676 = vmatpush1.xpose.msra.mxu0 0.0
        %677 = vmatprep.subr.mxu0 0.0
        %678 = vmatpush1.xpose.msra.mxu0 0.0
        %679 = vmatprep.subr.mxu0 0.0
        %680 = vmatpush1.xpose.msra.mxu0 0.0
        %681 = vmatprep.subr.mxu0 0.0
        %682 = vmatpush1.xpose.msra.mxu0 0.0
        %683 = vmatprep.subr.mxu0 0.0
        %684 = vmatpush1.xpose.msra.mxu0 0.0
        %685 = vmatprep.subr.mxu0 0.0
        %686 = vmatpush1.xpose.msra.mxu0 0.0
        %687 = vmatprep.subr.mxu0 0.0
        %688 = vmatpush1.xpose.msra.mxu0 0.0
        %689 = vmatprep.subr.mxu0 0.0
        %690 = vmatpush1.xpose.msra.mxu0 0.0
        %691 = vmatprep.subr.mxu0 0.0
        %692 = vmatpush1.xpose.msra.mxu0 0.0
        %693 = vmatprep.subr.mxu0 0.0
        %694 = vmatpush1.xpose.msra.mxu0 0.0
        %695 = vmatprep.subr.mxu0 0.0
        %696 = vmatpush1.xpose.msra.mxu0 0.0
        %697 = vmatprep.subr.mxu0 0.0
        %698 = vmatpush1.xpose.msra.mxu0 0.0
        %699 = vmatprep.subr.mxu0 0.0
        %700 = vmatpush1.xpose.msra.mxu0 0.0
        %701 = vmatprep.subr.mxu0 0.0
        %702 = vmatpush1.xpose.msra.mxu0 0.0
        %703 = vmatprep.subr.mxu0 0.0
        %704 = vmatpush1.xpose.msra.mxu0 0.0
        %705 = vmatprep.subr.mxu0 0.0
        %706 = vmatpush1.xpose.msra.mxu0 0.0
        %707 = vmatprep.subr.mxu0 0.0
        %708 = vmatpush1.xpose.msra.mxu0 0.0
        %709 = vmatprep.subr.mxu0 0.0
        %710 = vmatpush1.xpose.msra.mxu0 0.0
        %711 = vmatprep.mubr.f32.mxu0 0.0
        %712 = vmatmul.mubr.f32.gmra.mrb[0].mxu0 %v642
        %v713 = vpop.f32.mrb[0].mxu0
        %v714 = vadd.f32 %v635, %v713
        %v715 = vpop.f32.mrb[0].mxu0
        %716 = vdwg.mxu0
        %v717 = vsel %vm640, %v714, -inf
        %718 = vmax.xlane.f32.xlu0 %v717
        %v719 = vpop.xlane.xlu0 %718
        %v720 = vsub.f32 %v714, %v719
        %v721 = vmul.f32 %v720, 1.442695
        %v722 = vpow.pop %v721
        %v723 = vsel %vm640, %v722, 0.0
        %724 = vadd.xlane.f32.xlu0 %v723
        %v725 = vpop.xlane.xlu0 %724
        %v727 = vsel %vm640, %v722, 0
        %729 = vmatprep.subr.mxu0 0.0
        %730 = vmatpush1.msra.mxu0 %v627
        %731 = vmatprep.subr.mxu0 0.0
        %732 = vmatpush1.msra.mxu0 0.0
        %733 = vmatprep.subr.mxu0 0.0
        %734 = vmatpush1.msra.mxu0 0.0
        %735 = vmatprep.subr.mxu0 0.0
        %736 = vmatpush1.msra.mxu0 0.0
        %737 = vmatprep.subr.mxu0 0.0
        %738 = vmatpush1.msra.mxu0 0.0
        %739 = vmatprep.subr.mxu0 0.0
        %740 = vmatpush1.msra.mxu0 0.0
        %741 = vmatprep.subr.mxu0 0.0
        %742 = vmatpush1.msra.mxu0 0.0
        %743 = vmatprep.subr.mxu0 0.0
        %744 = vmatpush1.msra.mxu0 0.0
        %745 = vmatprep.subr.mxu0 0.0
        %746 = vmatpush1.msra.mxu0 0.0
        %747 = vmatprep.subr.mxu0 0.0
        %748 = vmatpush1.msra.mxu0 0.0
        %749 = vmatprep.subr.mxu0 0.0
        %750 = vmatpush1.msra.mxu0 0.0
        %751 = vmatprep.subr.mxu0 0.0
        %752 = vmatpush1.msra.mxu0 0.0
        %753 = vmatprep.subr.mxu0 0.0
        %754 = vmatpush1.msra.mxu0 0.0
        %755 = vmatprep.subr.mxu0 0.0
        %756 = vmatpush1.msra.mxu0 0.0
        %757 = vmatprep.subr.mxu0 0.0
        %758 = vmatpush1.msra.mxu0 0.0
        %759 = vmatprep.subr.mxu0 0.0
        %760 = vmatpush1.msra.mxu0 0.0
        %761 = vmatprep.subr.mxu0 0.0
        %762 = vmatpush1.msra.mxu0 0.0
        %763 = vmatprep.subr.mxu0 0.0
        %764 = vmatpush1.msra.mxu0 0.0
        %765 = vmatprep.subr.mxu0 0.0
        %766 = vmatpush1.msra.mxu0 0.0
        %767 = vmatprep.subr.mxu0 0.0
        %768 = vmatpush1.msra.mxu0 0.0
        %769 = vmatprep.subr.mxu0 0.0
        %770 = vmatpush1.msra.mxu0 0.0
        %771 = vmatprep.subr.mxu0 0.0
        %772 = vmatpush1.msra.mxu0 0.0
        %773 = vmatprep.subr.mxu0 0.0
        %774 = vmatpush1.msra.mxu0 0.0
        %775 = vmatprep.subr.mxu0 0.0
        %776 = vmatpush1.msra.mxu0 0.0
        %777 = vmatprep.subr.mxu0 0.0
        %778 = vmatpush1.msra.mxu0 0.0
        %779 = vmatprep.subr.mxu0 0.0
        %780 = vmatpush1.msra.mxu0 0.0
        %781 = vmatprep.subr.mxu0 0.0
        %782 = vmatpush1.msra.mxu0 0.0
        %783 = vmatprep.subr.mxu0 0.0
        %784 = vmatpush1.msra.mxu0 0.0
        %785 = vmatprep.subr.mxu0 0.0
        %786 = vmatpush1.msra.mxu0 0.0
        %787 = vmatprep.subr.mxu0 0.0
        %788 = vmatpush1.msra.mxu0 0.0
        %789 = vmatprep.subr.mxu0 0.0
        %790 = vmatpush1.msra.mxu0 0.0
        %791 = vmatprep.subr.mxu0 0.0
        %792 = vmatpush1.msra.mxu0 0.0
        %793 = vmatprep.mubr.f32.mxu0 0.0
        %794 = vmatmul.mubr.f32.gmra.mrb[0].mxu0 %v727
        %v795 = vpop.f32.mrb[0].mxu0
        %v796 = vadd.f32 0.0, %v795
        %v797 = vpop.f32.mrb[0].mxu0
        %798 = vdwg.mxu0
        %v799 = vrcp.pop %v725
        %v800 = vmul.f32 %v796, %v799
        %801 = vrot.lane.b32.xlu0 %v454, 120
        %v802 = vpop.permute.xlu0 %801
        %803 = vrot.lane.b32.xlu0 %v541, 120
        %v804 = vpop.permute.xlu0 %803
        %v805 = vsel %vm640, %v802, 0
        %v807 = vsel %vm640, %v804, 0
        %809 = vmatprep.subr.mxu0 0.0
        %810 = vmatpush1.xpose.msra.mxu0 %v807
        %811 = vmatprep.subr.mxu0 0.0
        %812 = vmatpush1.xpose.msra.mxu0 0.0
        %813 = vmatprep.subr.mxu0 0.0
        %814 = vmatpush1.xpose.msra.mxu0 0.0
        %815 = vmatprep.subr.mxu0 0.0
        %816 = vmatpush1.xpose.msra.mxu0 0.0
        %817 = vmatprep.subr.mxu0 0.0
        %818 = vmatpush1.xpose.msra.mxu0 0.0
        %819 = vmatprep.subr.mxu0 0.0
        %820 = vmatpush1.xpose.msra.mxu0 0.0
        %821 = vmatprep.subr.mxu0 0.0
        %822 = vmatpush1.xpose.msra.mxu0 0.0
        %823 = vmatprep.subr.mxu0 0.0
        %824 = vmatpush1.xpose.msra.mxu0 0.0
        %825 = vmatprep.subr.mxu0 0.0
        %826 = vmatpush1.xpose.msra.mxu0 0.0
        %827 = vmatprep.subr.mxu0 0.0
        %828 = vmatpush1.xpose.msra.mxu0 0.0
        %829 = vmatprep.subr.mxu0 0.0
        %830 = vmatpush1.xpose.msra.mxu0 0.0
        %831 = vmatprep.subr.mxu0 0.0
        %832 = vmatpush1.xpose.msra.mxu0 0.0
        %833 = vmatprep.subr.mxu0 0.0
        %834 = vmatpush1.xpose.msra.mxu0 0.0
        %835 = vmatprep.subr.mxu0 0.0
        %836 = vmatpush1.xpose.msra.mxu0 0.0
        %837 = vmatprep.subr.mxu0 0.0
        %838 = vmatpush1.xpose.msra.mxu0 0.0
        %839 = vmatprep.subr.mxu0 0.0
        %840 = vmatpush1.xpose.msra.mxu0 0.0
        %841 = vmatprep.subr.mxu0 0.0
        %842 = vmatpush1.xpose.msra.mxu0 0.0
        %843 = vmatprep.subr.mxu0 0.0
        %844 = vmatpush1.xpose.msra.mxu0 0.0
        %845 = vmatprep.subr.mxu0 0.0
        %846 = vmatpush1.xpose.msra.mxu0 0.0
        %847 = vmatprep.subr.mxu0 0.0
        %848 = vmatpush1.xpose.msra.mxu0 0.0
        %849 = vmatprep.subr.mxu0 0.0
        %850 = vmatpush1.xpose.msra.mxu0 0.0
        %851 = vmatprep.subr.mxu0 0.0
        %852 = vmatpush1.xpose.msra.mxu0 0.0
        %853 = vmatprep.subr.mxu0 0.0
        %854 = vmatpush1.xpose.msra.mxu0 0.0
        %855 = vmatprep.subr.mxu0 0.0
        %856 = vmatpush1.xpose.msra.mxu0 0.0
        %857 = vmatprep.subr.mxu0 0.0
        %858 = vmatpush1.xpose.msra.mxu0 0.0
        %859 = vmatprep.subr.mxu0 0.0
        %860 = vmatpush1.xpose.msra.mxu0 0.0
        %861 = vmatprep.subr.mxu0 0.0
        %862 = vmatpush1.xpose.msra.mxu0 0.0
        %863 = vmatprep.subr.mxu0 0.0
        %864 = vmatpush1.xpose.msra.mxu0 0.0
        %865 = vmatprep.subr.mxu0 0.0
        %866 = vmatpush1.xpose.msra.mxu0 0.0
        %867 = vmatprep.subr.mxu0 0.0
        %868 = vmatpush1.xpose.msra.mxu0 0.0
        %869 = vmatprep.subr.mxu0 0.0
        %870 = vmatpush1.xpose.msra.mxu0 0.0
        %871 = vmatprep.subr.mxu0 0.0
        %872 = vmatpush1.xpose.msra.mxu0 0.0
        %873 = vmatprep.mubr.f32.mxu0 0.0
        %874 = vmatmul.mubr.f32.gmra.mrb[0].mxu0 %v805
        %v875 = vpop.f32.mrb[0].mxu0
        %v876 = vadd.f32 %v635, %v875
        %v877 = vpop.f32.mrb[0].mxu0
        %878 = vdwg.mxu0
        %v879 = vsel %vm640, %v876, -inf
        %880 = vmax.xlane.f32.xlu0 %v879
        %v881 = vpop.xlane.xlu0 %880
        %v882 = vsub.f32 %v876, %v881
        %v883 = vmul.f32 %v882, 1.442695
        %v884 = vpow.pop %v883
        %v885 = vsel %vm640, %v884, 0.0
        %886 = vadd.xlane.f32.xlu0 %v885
        %v887 = vpop.xlane.xlu0 %886
        %889 = vrot.lane.b32.xlu0 %v627, 120
        %v890 = vpop.permute.xlu0 %889
        %v893 = vsel %vm640, %v884, 0
        %895 = vmatprep.subr.mxu0 0.0
        %896 = vmatpush1.msra.mxu0 %v890
        %897 = vmatprep.subr.mxu0 0.0
        %898 = vmatpush1.msra.mxu0 0.0
        %899 = vmatprep.subr.mxu0 0.0
        %900 = vmatpush1.msra.mxu0 0.0
        %901 = vmatprep.subr.mxu0 0.0
        %902 = vmatpush1.msra.mxu0 0.0
        %903 = vmatprep.subr.mxu0 0.0
        %904 = vmatpush1.msra.mxu0 0.0
        %905 = vmatprep.subr.mxu0 0.0
        %906 = vmatpush1.msra.mxu0 0.0
        %907 = vmatprep.subr.mxu0 0.0
        %908 = vmatpush1.msra.mxu0 0.0
        %909 = vmatprep.subr.mxu0 0.0
        %910 = vmatpush1.msra.mxu0 0.0
        %911 = vmatprep.subr.mxu0 0.0
        %912 = vmatpush1.msra.mxu0 0.0
        %913 = vmatprep.subr.mxu0 0.0
        %914 = vmatpush1.msra.mxu0 0.0
        %915 = vmatprep.subr.mxu0 0.0
        %916 = vmatpush1.msra.mxu0 0.0
        %917 = vmatprep.subr.mxu0 0.0
        %918 = vmatpush1.msra.mxu0 0.0
        %919 = vmatprep.subr.mxu0 0.0
        %920 = vmatpush1.msra.mxu0 0.0
        %921 = vmatprep.subr.mxu0 0.0
        %922 = vmatpush1.msra.mxu0 0.0
        %923 = vmatprep.subr.mxu0 0.0
        %924 = vmatpush1.msra.mxu0 0.0
        %925 = vmatprep.subr.mxu0 0.0
        %926 = vmatpush1.msra.mxu0 0.0
        %927 = vmatprep.subr.mxu0 0.0
        %928 = vmatpush1.msra.mxu0 0.0
        %929 = vmatprep.subr.mxu0 0.0
        %930 = vmatpush1.msra.mxu0 0.0
        %931 = vmatprep.subr.mxu0 0.0
        %932 = vmatpush1.msra.mxu0 0.0
        %933 = vmatprep.subr.mxu0 0.0
        %934 = vmatpush1.msra.mxu0 0.0
        %935 = vmatprep.subr.mxu0 0.0
        %936 = vmatpush1.msra.mxu0 0.0
        %937 = vmatprep.subr.mxu0 0.0
        %938 = vmatpush1.msra.mxu0 0.0
        %939 = vmatprep.subr.mxu0 0.0
        %940 = vmatpush1.msra.mxu0 0.0
        %941 = vmatprep.subr.mxu0 0.0
        %942 = vmatpush1.msra.mxu0 0.0
        %943 = vmatprep.subr.mxu0 0.0
        %944 = vmatpush1.msra.mxu0 0.0
        %945 = vmatprep.subr.mxu0 0.0
        %946 = vmatpush1.msra.mxu0 0.0
        %947 = vmatprep.subr.mxu0 0.0
        %948 = vmatpush1.msra.mxu0 0.0
        %949 = vmatprep.subr.mxu0 0.0
        %950 = vmatpush1.msra.mxu0 0.0
        %951 = vmatprep.subr.mxu0 0.0
        %952 = vmatpush1.msra.mxu0 0.0
        %953 = vmatprep.subr.mxu0 0.0
        %954 = vmatpush1.msra.mxu0 0.0
        %955 = vmatprep.subr.mxu0 0.0
        %956 = vmatpush1.msra.mxu0 0.0
        %957 = vmatprep.subr.mxu0 0.0
        %958 = vmatpush1.msra.mxu0 0.0
        %959 = vmatprep.mubr.f32.mxu0 0.0
        %960 = vmatmul.mubr.f32.gmra.mrb[0].mxu0 %v893
        %v961 = vpop.f32.mrb[0].mxu0
        %v962 = vadd.f32 0.0, %v961
        %v963 = vpop.f32.mrb[0].mxu0
        %964 = vdwg.mxu0
        %v965 = vrcp.pop %v887
        %v966 = vmul.f32 %v962, %v965
        %971 = vrot.lane.b32.xlu0 %v636, 120
        %v972 = vpop.permute.xlu0 %971
        %973 = vrot.lane.b32.xlu0 %v637, 120
        %v974 = vpop.permute.xlu0 %973
        %975 = vrot.lane.b32.xlu0 %v638, 120
        %v976 = vpop.permute.xlu0 %975
        %977 = vrot.lane.b32.xlu0 %v639, 120
        %v978 = vpop.permute.xlu0 %977
        %v980 = vsel %vm640, %v966, 0
        %v982 = vsel %vm640, %v972, 0
        %v984 = vsel %vm640, %v974, 0
        %v986 = vsel %vm640, %v976, 0
        %v988 = vsel %vm640, %v978, 0
        %990 = vmatprep.subr.mxu0 0.0
        %991 = vmatpush1.xpose.msra.mxu0 %v982
        %992 = vmatprep.subr.mxu0 0.0
        %993 = vmatpush1.xpose.msra.mxu0 %v984
        %994 = vmatprep.subr.mxu0 0.0
        %995 = vmatpush1.xpose.msra.mxu0 %v986
        %996 = vmatprep.subr.mxu0 0.0
        %997 = vmatpush1.xpose.msra.mxu0 %v988
        %998 = vmatprep.subr.mxu0 0.0
        %999 = vmatpush1.xpose.msra.mxu0 0.0
        %1000 = vmatprep.subr.mxu0 0.0
        %1001 = vmatpush1.xpose.msra.mxu0 0.0
        %1002 = vmatprep.subr.mxu0 0.0
        %1003 = vmatpush1.xpose.msra.mxu0 0.0
        %1004 = vmatprep.subr.mxu0 0.0
        %1005 = vmatpush1.xpose.msra.mxu0 0.0
        %1006 = vmatprep.subr.mxu0 0.0
        %1007 = vmatpush1.xpose.msra.mxu0 0.0
        %1008 = vmatprep.subr.mxu0 0.0
        %1009 = vmatpush1.xpose.msra.mxu0 0.0
        %1010 = vmatprep.subr.mxu0 0.0
        %1011 = vmatpush1.xpose.msra.mxu0 0.0
        %1012 = vmatprep.subr.mxu0 0.0
        %1013 = vmatpush1.xpose.msra.mxu0 0.0
        %1014 = vmatprep.subr.mxu0 0.0
        %1015 = vmatpush1.xpose.msra.mxu0 0.0
        %1016 = vmatprep.subr.mxu0 0.0
        %1017 = vmatpush1.xpose.msra.mxu0 0.0
        %1018 = vmatprep.subr.mxu0 0.0
        %1019 = vmatpush1.xpose.msra.mxu0 0.0
        %1020 = vmatprep.subr.mxu0 0.0
        %1021 = vmatpush1.xpose.msra.mxu0 0.0
        %1022 = vmatprep.subr.mxu0 0.0
        %1023 = vmatpush1.xpose.msra.mxu0 0.0
        %1024 = vmatprep.subr.mxu0 0.0
        %1025 = vmatpush1.xpose.msra.mxu0 0.0
        %1026 = vmatprep.subr.mxu0 0.0
        %1027 = vmatpush1.xpose.msra.mxu0 0.0
        %1028 = vmatprep.subr.mxu0 0.0
        %1029 = vmatpush1.xpose.msra.mxu0 0.0
        %1030 = vmatprep.subr.mxu0 0.0
        %1031 = vmatpush1.xpose.msra.mxu0 0.0
        %1032 = vmatprep.subr.mxu0 0.0
        %1033 = vmatpush1.xpose.msra.mxu0 0.0
        %1034 = vmatprep.subr.mxu0 0.0
        %1035 = vmatpush1.xpose.msra.mxu0 0.0
        %1036 = vmatprep.subr.mxu0 0.0
        %1037 = vmatpush1.xpose.msra.mxu0 0.0
        %1038 = vmatprep.subr.mxu0 0.0
        %1039 = vmatpush1.xpose.msra.mxu0 0.0
        %1040 = vmatprep.subr.mxu0 0.0
        %1041 = vmatpush1.xpose.msra.mxu0 0.0
        %1042 = vmatprep.subr.mxu0 0.0
        %1043 = vmatpush1.xpose.msra.mxu0 0.0
        %1044 = vmatprep.subr.mxu0 0.0
        %1045 = vmatpush1.xpose.msra.mxu0 0.0
        %1046 = vmatprep.subr.mxu0 0.0
        %1047 = vmatpush1.xpose.msra.mxu0 0.0
        %1048 = vmatprep.subr.mxu0 0.0
        %1049 = vmatpush1.xpose.msra.mxu0 0.0
        %1050 = vmatprep.subr.mxu0 0.0
        %1051 = vmatpush1.xpose.msra.mxu0 0.0
        %1052 = vmatprep.subr.mxu0 0.0
        %1053 = vmatpush1.xpose.msra.mxu0 0.0
        %1054 = vmatprep.mubr.f32.mxu0 0.0
        %1055 = vmatmul.mubr.f32.gmra.mrb[0].mxu0 %v980
        %v1056 = vpop.f32.mrb[0].mxu0
        %v1057 = vadd.f32 0.0, %v1056
        %v1058 = vpop.f32.mrb[0].mxu0
        %1059 = vdwg.mxu0
        %v1061 = vsel %vm640, %v800, 0
        %v1063 = vsel %vm640, %v636, 0
        %v1065 = vsel %vm640, %v637, 0
        %v1067 = vsel %vm640, %v638, 0
        %v1069 = vsel %vm640, %v639, 0
        %1071 = vmatprep.subr.mxu0 0.0
        %1072 = vmatpush1.xpose.msra.mxu0 %v1063
        %1073 = vmatprep.subr.mxu0 0.0
        %1074 = vmatpush1.xpose.msra.mxu0 %v1065
        %1075 = vmatprep.subr.mxu0 0.0
        %1076 = vmatpush1.xpose.msra.mxu0 %v1067
        %1077 = vmatprep.subr.mxu0 0.0
        %1078 = vmatpush1.xpose.msra.mxu0 %v1069
        %1079 = vmatprep.subr.mxu0 0.0
        %1080 = vmatpush1.xpose.msra.mxu0 0.0
        %1081 = vmatprep.subr.mxu0 0.0
        %1082 = vmatpush1.xpose.msra.mxu0 0.0
        %1083 = vmatprep.subr.mxu0 0.0
        %1084 = vmatpush1.xpose.msra.mxu0 0.0
        %1085 = vmatprep.subr.mxu0 0.0
        %1086 = vmatpush1.xpose.msra.mxu0 0.0
        %1087 = vmatprep.subr.mxu0 0.0
        %1088 = vmatpush1.xpose.msra.mxu0 0.0
        %1089 = vmatprep.subr.mxu0 0.0
        %1090 = vmatpush1.xpose.msra.mxu0 0.0
        %1091 = vmatprep.subr.mxu0 0.0
        %1092 = vmatpush1.xpose.msra.mxu0 0.0
        %1093 = vmatprep.subr.mxu0 0.0
        %1094 = vmatpush1.xpose.msra.mxu0 0.0
        %1095 = vmatprep.subr.mxu0 0.0
        %1096 = vmatpush1.xpose.msra.mxu0 0.0
        %1097 = vmatprep.subr.mxu0 0.0
        %1098 = vmatpush1.xpose.msra.mxu0 0.0
        %1099 = vmatprep.subr.mxu0 0.0
        %1100 = vmatpush1.xpose.msra.mxu0 0.0
        %1101 = vmatprep.subr.mxu0 0.0
        %1102 = vmatpush1.xpose.msra.mxu0 0.0
        %1103 = vmatprep.subr.mxu0 0.0
        %1104 = vmatpush1.xpose.msra.mxu0 0.0
        %1105 = vmatprep.subr.mxu0 0.0
        %1106 = vmatpush1.xpose.msra.mxu0 0.0
        %1107 = vmatprep.subr.mxu0 0.0
        %1108 = vmatpush1.xpose.msra.mxu0 0.0
        %1109 = vmatprep.subr.mxu0 0.0
        %1110 = vmatpush1.xpose.msra.mxu0 0.0
        %1111 = vmatprep.subr.mxu0 0.0
        %1112 = vmatpush1.xpose.msra.mxu0 0.0
        %1113 = vmatprep.subr.mxu0 0.0
        %1114 = vmatpush1.xpose.msra.mxu0 0.0
        %1115 = vmatprep.subr.mxu0 0.0
        %1116 = vmatpush1.xpose.msra.mxu0 0.0
        %1117 = vmatprep.subr.mxu0 0.0
        %1118 = vmatpush1.xpose.msra.mxu0 0.0
        %1119 = vmatprep.subr.mxu0 0.0
        %1120 = vmatpush1.xpose.msra.mxu0 0.0
        %1121 = vmatprep.subr.mxu0 0.0
        %1122 = vmatpush1.xpose.msra.mxu0 0.0
        %1123 = vmatprep.subr.mxu0 0.0
        %1124 = vmatpush1.xpose.msra.mxu0 0.0
        %1125 = vmatprep.subr.mxu0 0.0
        %1126 = vmatpush1.xpose.msra.mxu0 0.0
        %1127 = vmatprep.subr.mxu0 0.0
        %1128 = vmatpush1.xpose.msra.mxu0 0.0
        %1129 = vmatprep.subr.mxu0 0.0
        %1130 = vmatpush1.xpose.msra.mxu0 0.0
        %1131 = vmatprep.subr.mxu0 0.0
        %1132 = vmatpush1.xpose.msra.mxu0 0.0
        %1133 = vmatprep.subr.mxu0 0.0
        %1134 = vmatpush1.xpose.msra.mxu0 0.0
        %1135 = vmatprep.mubr.f32.mxu0 0.0
        %1136 = vmatmul.mubr.f32.gmra.mrb[0].mxu0 %v1061
        %v1137 = vpop.f32.mrb[0].mxu0
        %v1138 = vadd.f32 %v1057, %v1137
        %v1139 = vpop.f32.mrb[0].mxu0
        %1140 = vdwg.mxu0
        %1141 = vrot.lane.b32.xlu0 %v454, 112
        %v1142 = vpop.permute.xlu0 %1141
        %1143 = vrot.lane.b32.xlu0 %v541, 112
        %v1144 = vpop.permute.xlu0 %1143
        %v1145 = vsel %vm640, %v1142, 0
        %v1147 = vsel %vm640, %v1144, 0
        %1149 = vmatprep.subr.mxu0 0.0
        %1150 = vmatpush1.xpose.msra.mxu0 %v1147
        %1151 = vmatprep.subr.mxu0 0.0
        %1152 = vmatpush1.xpose.msra.mxu0 0.0
        %1153 = vmatprep.subr.mxu0 0.0
        %1154 = vmatpush1.xpose.msra.mxu0 0.0
        %1155 = vmatprep.subr.mxu0 0.0
        %1156 = vmatpush1.xpose.msra.mxu0 0.0
        %1157 = vmatprep.subr.mxu0 0.0
        %1158 = vmatpush1.xpose.msra.mxu0 0.0
        %1159 = vmatprep.subr.mxu0 0.0
        %1160 = vmatpush1.xpose.msra.mxu0 0.0
        %1161 = vmatprep.subr.mxu0 0.0
        %1162 = vmatpush1.xpose.msra.mxu0 0.0
        %1163 = vmatprep.subr.mxu0 0.0
        %1164 = vmatpush1.xpose.msra.mxu0 0.0
        %1165 = vmatprep.subr.mxu0 0.0
        %1166 = vmatpush1.xpose.msra.mxu0 0.0
        %1167 = vmatprep.subr.mxu0 0.0
        %1168 = vmatpush1.xpose.msra.mxu0 0.0
        %1169 = vmatprep.subr.mxu0 0.0
        %1170 = vmatpush1.xpose.msra.mxu0 0.0
        %1171 = vmatprep.subr.mxu0 0.0
        %1172 = vmatpush1.xpose.msra.mxu0 0.0
        %1173 = vmatprep.subr.mxu0 0.0
        %1174 = vmatpush1.xpose.msra.mxu0 0.0
        %1175 = vmatprep.subr.mxu0 0.0
        %1176 = vmatpush1.xpose.msra.mxu0 0.0
        %1177 = vmatprep.subr.mxu0 0.0
        %1178 = vmatpush1.xpose.msra.mxu0 0.0
        %1179 = vmatprep.subr.mxu0 0.0
        %1180 = vmatpush1.xpose.msra.mxu0 0.0
        %1181 = vmatprep.subr.mxu0 0.0
        %1182 = vmatpush1.xpose.msra.mxu0 0.0
        %1183 = vmatprep.subr.mxu0 0.0
        %1184 = vmatpush1.xpose.msra.mxu0 0.0
        %1185 = vmatprep.subr.mxu0 0.0
        %1186 = vmatpush1.xpose.msra.mxu0 0.0
        %1187 = vmatprep.subr.mxu0 0.0
        %1188 = vmatpush1.xpose.msra.mxu0 0.0
        %1189 = vmatprep.subr.mxu0 0.0
        %1190 = vmatpush1.xpose.msra.mxu0 0.0
        %1191 = vmatprep.subr.mxu0 0.0
        %1192 = vmatpush1.xpose.msra.mxu0 0.0
        %1193 = vmatprep.subr.mxu0 0.0
        %1194 = vmatpush1.xpose.msra.mxu0 0.0
        %1195 = vmatprep.subr.mxu0 0.0
        %1196 = vmatpush1.xpose.msra.mxu0 0.0
        %1197 = vmatprep.subr.mxu0 0.0
        %1198 = vmatpush1.xpose.msra.mxu0 0.0
        %1199 = vmatprep.subr.mxu0 0.0
        %1200 = vmatpush1.xpose.msra.mxu0 0.0
        %1201 = vmatprep.subr.mxu0 0.0
        %1202 = vmatpush1.xpose.msra.mxu0 0.0
        %1203 = vmatprep.subr.mxu0 0.0
        %1204 = vmatpush1.xpose.msra.mxu0 0.0
        %1205 = vmatprep.subr.mxu0 0.0
        %1206 = vmatpush1.xpose.msra.mxu0 0.0
        %1207 = vmatprep.subr.mxu0 0.0
        %1208 = vmatpush1.xpose.msra.mxu0 0.0
        %1209 = vmatprep.subr.mxu0 0.0
        %1210 = vmatpush1.xpose.msra.mxu0 0.0
        %1211 = vmatprep.subr.mxu0 0.0
        %1212 = vmatpush1.xpose.msra.mxu0 0.0
        %1213 = vmatprep.mubr.f32.mxu0 0.0
        %1214 = vmatmul.mubr.f32.gmra.mrb[0].mxu0 %v1145
        %v1215 = vpop.f32.mrb[0].mxu0
        %v1216 = vadd.f32 %v635, %v1215
        %v1217 = vpop.f32.mrb[0].mxu0
        %1218 = vdwg.mxu0
        %v1219 = vsel %vm640, %v1216, -inf
        %1220 = vmax.xlane.f32.xlu0 %v1219
        %v1221 = vpop.xlane.xlu0 %1220
        %v1222 = vsub.f32 %v1216, %v1221
        %v1223 = vmul.f32 %v1222, 1.442695
        %v1224 = vpow.pop %v1223
        %v1225 = vsel %vm640, %v1224, 0.0
        %1226 = vadd.xlane.f32.xlu0 %v1225
        %v1227 = vpop.xlane.xlu0 %1226
        %1228 = vrot.lane.b32.xlu0 %v627, 112
        %v1229 = vpop.permute.xlu0 %1228
        %v1232 = vsel %vm640, %v1224, 0
        %1234 = vmatprep.subr.mxu0 0.0
        %1235 = vmatpush1.msra.mxu0 %v1229
        %1236 = vmatprep.subr.mxu0 0.0
        %1237 = vmatpush1.msra.mxu0 0.0
        %1238 = vmatprep.subr.mxu0 0.0
        %1239 = vmatpush1.msra.mxu0 0.0
        %1240 = vmatprep.subr.mxu0 0.0
        %1241 = vmatpush1.msra.mxu0 0.0
        %1242 = vmatprep.subr.mxu0 0.0
        %1243 = vmatpush1.msra.mxu0 0.0
        %1244 = vmatprep.subr.mxu0 0.0
        %1245 = vmatpush1.msra.mxu0 0.0
        %1246 = vmatprep.subr.mxu0 0.0
        %1247 = vmatpush1.msra.mxu0 0.0
        %1248 = vmatprep.subr.mxu0 0.0
        %1249 = vmatpush1.msra.mxu0 0.0
        %1250 = vmatprep.subr.mxu0 0.0
        %1251 = vmatpush1.msra.mxu0 0.0
        %1252 = vmatprep.subr.mxu0 0.0
        %1253 = vmatpush1.msra.mxu0 0.0
        %1254 = vmatprep.subr.mxu0 0.0
        %1255 = vmatpush1.msra.mxu0 0.0
        %1256 = vmatprep.subr.mxu0 0.0
        %1257 = vmatpush1.msra.mxu0 0.0
        %1258 = vmatprep.subr.mxu0 0.0
        %1259 = vmatpush1.msra.mxu0 0.0
        %1260 = vmatprep.subr.mxu0 0.0
        %1261 = vmatpush1.msra.mxu0 0.0
        %1262 = vmatprep.subr.mxu0 0.0
        %1263 = vmatpush1.msra.mxu0 0.0
        %1264 = vmatprep.subr.mxu0 0.0
        %1265 = vmatpush1.msra.mxu0 0.0
        %1266 = vmatprep.subr.mxu0 0.0
        %1267 = vmatpush1.msra.mxu0 0.0
        %1268 = vmatprep.subr.mxu0 0.0
        %1269 = vmatpush1.msra.mxu0 0.0
        %1270 = vmatprep.subr.mxu0 0.0
        %1271 = vmatpush1.msra.mxu0 0.0
        %1272 = vmatprep.subr.mxu0 0.0
        %1273 = vmatpush1.msra.mxu0 0.0
        %1274 = vmatprep.subr.mxu0 0.0
        %1275 = vmatpush1.msra.mxu0 0.0
        %1276 = vmatprep.subr.mxu0 0.0
        %1277 = vmatpush1.msra.mxu0 0.0
        %1278 = vmatprep.subr.mxu0 0.0
        %1279 = vmatpush1.msra.mxu0 0.0
        %1280 = vmatprep.subr.mxu0 0.0
        %1281 = vmatpush1.msra.mxu0 0.0
        %1282 = vmatprep.subr.mxu0 0.0
        %1283 = vmatpush1.msra.mxu0 0.0
        %1284 = vmatprep.subr.mxu0 0.0
        %1285 = vmatpush1.msra.mxu0 0.0
        %1286 = vmatprep.subr.mxu0 0.0
        %1287 = vmatpush1.msra.mxu0 0.0
        %1288 = vmatprep.subr.mxu0 0.0
        %1289 = vmatpush1.msra.mxu0 0.0
        %1290 = vmatprep.subr.mxu0 0.0
        %1291 = vmatpush1.msra.mxu0 0.0
        %1292 = vmatprep.subr.mxu0 0.0
        %1293 = vmatpush1.msra.mxu0 0.0
        %1294 = vmatprep.subr.mxu0 0.0
        %1295 = vmatpush1.msra.mxu0 0.0
        %1296 = vmatprep.subr.mxu0 0.0
        %1297 = vmatpush1.msra.mxu0 0.0
        %1298 = vmatprep.mubr.f32.mxu0 0.0
        %1299 = vmatmul.mubr.f32.gmra.mrb[0].mxu0 %v1232
        %v1300 = vpop.f32.mrb[0].mxu0
        %v1301 = vadd.f32 0.0, %v1300
        %v1302 = vpop.f32.mrb[0].mxu0
        %1303 = vdwg.mxu0
        %v1304 = vrcp.pop %v1227
        %v1305 = vmul.f32 %v1301, %v1304
        %1306 = vrot.lane.b32.xlu0 %v636, 112
        %v1307 = vpop.permute.xlu0 %1306
        %1308 = vrot.lane.b32.xlu0 %v637, 112
        %v1309 = vpop.permute.xlu0 %1308
        %1310 = vrot.lane.b32.xlu0 %v638, 112
        %v1311 = vpop.permute.xlu0 %1310
        %1312 = vrot.lane.b32.xlu0 %v639, 112
        %v1313 = vpop.permute.xlu0 %1312
        %v1315 = vsel %vm640, %v1305, 0
        %v1317 = vsel %vm640, %v1307, 0
        %v1319 = vsel %vm640, %v1309, 0
        %v1321 = vsel %vm640, %v1311, 0
        %v1323 = vsel %vm640, %v1313, 0
        %1325 = vmatprep.subr.mxu0 0.0
        %1326 = vmatpush1.xpose.msra.mxu0 %v1317
        %1327 = vmatprep.subr.mxu0 0.0
        %1328 = vmatpush1.xpose.msra.mxu0 %v1319
        %1329 = vmatprep.subr.mxu0 0.0
        %1330 = vmatpush1.xpose.msra.mxu0 %v1321
        %1331 = vmatprep.subr.mxu0 0.0
        %1332 = vmatpush1.xpose.msra.mxu0 %v1323
        %1333 = vmatprep.subr.mxu0 0.0
        %1334 = vmatpush1.xpose.msra.mxu0 0.0
        %1335 = vmatprep.subr.mxu0 0.0
        %1336 = vmatpush1.xpose.msra.mxu0 0.0
        %1337 = vmatprep.subr.mxu0 0.0
        %1338 = vmatpush1.xpose.msra.mxu0 0.0
        %1339 = vmatprep.subr.mxu0 0.0
        %1340 = vmatpush1.xpose.msra.mxu0 0.0
        %1341 = vmatprep.subr.mxu0 0.0
        %1342 = vmatpush1.xpose.msra.mxu0 0.0
        %1343 = vmatprep.subr.mxu0 0.0
        %1344 = vmatpush1.xpose.msra.mxu0 0.0
        %1345 = vmatprep.subr.mxu0 0.0
        %1346 = vmatpush1.xpose.msra.mxu0 0.0
        %1347 = vmatprep.subr.mxu0 0.0
        %1348 = vmatpush1.xpose.msra.mxu0 0.0
        %1349 = vmatprep.subr.mxu0 0.0
        %1350 = vmatpush1.xpose.msra.mxu0 0.0
        %1351 = vmatprep.subr.mxu0 0.0
        %1352 = vmatpush1.xpose.msra.mxu0 0.0
        %1353 = vmatprep.subr.mxu0 0.0
        %1354 = vmatpush1.xpose.msra.mxu0 0.0
        %1355 = vmatprep.subr.mxu0 0.0
        %1356 = vmatpush1.xpose.msra.mxu0 0.0
        %1357 = vmatprep.subr.mxu0 0.0
        %1358 = vmatpush1.xpose.msra.mxu0 0.0
        %1359 = vmatprep.subr.mxu0 0.0
        %1360 = vmatpush1.xpose.msra.mxu0 0.0
        %1361 = vmatprep.subr.mxu0 0.0
        %1362 = vmatpush1.xpose.msra.mxu0 0.0
        %1363 = vmatprep.subr.mxu0 0.0
        %1364 = vmatpush1.xpose.msra.mxu0 0.0
        %1365 = vmatprep.subr.mxu0 0.0
        %1366 = vmatpush1.xpose.msra.mxu0 0.0
        %1367 = vmatprep.subr.mxu0 0.0
        %1368 = vmatpush1.xpose.msra.mxu0 0.0
        %1369 = vmatprep.subr.mxu0 0.0
        %1370 = vmatpush1.xpose.msra.mxu0 0.0
        %1371 = vmatprep.subr.mxu0 0.0
        %1372 = vmatpush1.xpose.msra.mxu0 0.0
        %1373 = vmatprep.subr.mxu0 0.0
        %1374 = vmatpush1.xpose.msra.mxu0 0.0
        %1375 = vmatprep.subr.mxu0 0.0
        %1376 = vmatpush1.xpose.msra.mxu0 0.0
        %1377 = vmatprep.subr.mxu0 0.0
        %1378 = vmatpush1.xpose.msra.mxu0 0.0
        %1379 = vmatprep.subr.mxu0 0.0
        %1380 = vmatpush1.xpose.msra.mxu0 0.0
        %1381 = vmatprep.subr.mxu0 0.0
        %1382 = vmatpush1.xpose.msra.mxu0 0.0
        %1383 = vmatprep.subr.mxu0 0.0
        %1384 = vmatpush1.xpose.msra.mxu0 0.0
        %1385 = vmatprep.subr.mxu0 0.0
        %1386 = vmatpush1.xpose.msra.mxu0 0.0
        %1387 = vmatprep.subr.mxu0 0.0
        %1388 = vmatpush1.xpose.msra.mxu0 0.0
        %1389 = vmatprep.mubr.f32.mxu0 0.0
        %1390 = vmatmul.mubr.f32.gmra.mrb[0].mxu0 %v1315
        %v1391 = vpop.f32.mrb[0].mxu0
        %v1392 = vadd.f32 0.0, %v1391
        %v1393 = vpop.f32.mrb[0].mxu0
        %1394 = vdwg.mxu0
        %v1395 = vadd.f32 %v1138, %v1392
        %1396 = vrot.lane.b32.xlu0 %v454, 104
        %v1397 = vpop.permute.xlu0 %1396
        %1398 = vrot.lane.b32.xlu0 %v541, 104
        %v1399 = vpop.permute.xlu0 %1398
        %v1400 = vsel %vm640, %v1397, 0
        %v1402 = vsel %vm640, %v1399, 0
        %1404 = vmatprep.subr.mxu0 0.0
        %1405 = vmatpush1.xpose.msra.mxu0 %v1402
        %1406 = vmatprep.subr.mxu0 0.0
        %1407 = vmatpush1.xpose.msra.mxu0 0.0
        %1408 = vmatprep.subr.mxu0 0.0
        %1409 = vmatpush1.xpose.msra.mxu0 0.0
        %1410 = vmatprep.subr.mxu0 0.0
        %1411 = vmatpush1.xpose.msra.mxu0 0.0
        %1412 = vmatprep.subr.mxu0 0.0
        %1413 = vmatpush1.xpose.msra.mxu0 0.0
        %1414 = vmatprep.subr.mxu0 0.0
        %1415 = vmatpush1.xpose.msra.mxu0 0.0
        %1416 = vmatprep.subr.mxu0 0.0
        %1417 = vmatpush1.xpose.msra.mxu0 0.0
        %1418 = vmatprep.subr.mxu0 0.0
        %1419 = vmatpush1.xpose.msra.mxu0 0.0
        %1420 = vmatprep.subr.mxu0 0.0
        %1421 = vmatpush1.xpose.msra.mxu0 0.0
        %1422 = vmatprep.subr.mxu0 0.0
        %1423 = vmatpush1.xpose.msra.mxu0 0.0
        %1424 = vmatprep.subr.mxu0 0.0
        %1425 = vmatpush1.xpose.msra.mxu0 0.0
        %1426 = vmatprep.subr.mxu0 0.0
        %1427 = vmatpush1.xpose.msra.mxu0 0.0
        %1428 = vmatprep.subr.mxu0 0.0
        %1429 = vmatpush1.xpose.msra.mxu0 0.0
        %1430 = vmatprep.subr.mxu0 0.0
        %1431 = vmatpush1.xpose.msra.mxu0 0.0
        %1432 = vmatprep.subr.mxu0 0.0
        %1433 = vmatpush1.xpose.msra.mxu0 0.0
        %1434 = vmatprep.subr.mxu0 0.0
        %1435 = vmatpush1.xpose.msra.mxu0 0.0
        %1436 = vmatprep.subr.mxu0 0.0
        %1437 = vmatpush1.xpose.msra.mxu0 0.0
        %1438 = vmatprep.subr.mxu0 0.0
        %1439 = vmatpush1.xpose.msra.mxu0 0.0
        %1440 = vmatprep.subr.mxu0 0.0
        %1441 = vmatpush1.xpose.msra.mxu0 0.0
        %1442 = vmatprep.subr.mxu0 0.0
        %1443 = vmatpush1.xpose.msra.mxu0 0.0
        %1444 = vmatprep.subr.mxu0 0.0
        %1445 = vmatpush1.xpose.msra.mxu0 0.0
        %1446 = vmatprep.subr.mxu0 0.0
        %1447 = vmatpush1.xpose.msra.mxu0 0.0
        %1448 = vmatprep.subr.mxu0 0.0
        %1449 = vmatpush1.xpose.msra.mxu0 0.0
        %1450 = vmatprep.subr.mxu0 0.0
        %1451 = vmatpush1.xpose.msra.mxu0 0.0
        %1452 = vmatprep.subr.mxu0 0.0
        %1453 = vmatpush1.xpose.msra.mxu0 0.0
        %1454 = vmatprep.subr.mxu0 0.0
        %1455 = vmatpush1.xpose.msra.mxu0 0.0
        %1456 = vmatprep.subr.mxu0 0.0
        %1457 = vmatpush1.xpose.msra.mxu0 0.0
        %1458 = vmatprep.subr.mxu0 0.0
        %1459 = vmatpush1.xpose.msra.mxu0 0.0
        %1460 = vmatprep.subr.mxu0 0.0
        %1461 = vmatpush1.xpose.msra.mxu0 0.0
        %1462 = vmatprep.subr.mxu0 0.0
        %1463 = vmatpush1.xpose.msra.mxu0 0.0
        %1464 = vmatprep.subr.mxu0 0.0
        %1465 = vmatpush1.xpose.msra.mxu0 0.0
        %1466 = vmatprep.subr.mxu0 0.0
        %1467 = vmatpush1.xpose.msra.mxu0 0.0
        %1468 = vmatprep.mubr.f32.mxu0 0.0
        %1469 = vmatmul.mubr.f32.gmra.mrb[0].mxu0 %v1400
        %v1470 = vpop.f32.mrb[0].mxu0
        %v1471 = vadd.f32 %v635, %v1470
        %v1472 = vpop.f32.mrb[0].mxu0
        %1473 = vdwg.mxu0
        %v1474 = vsel %vm640, %v1471, -inf
        %1475 = vmax.xlane.f32.xlu0 %v1474
        %v1476 = vpop.xlane.xlu0 %1475
        %v1477 = vsub.f32 %v1471, %v1476
        %v1478 = vmul.f32 %v1477, 1.442695
        %v1479 = vpow.pop %v1478
        %v1480 = vsel %vm640, %v1479, 0.0
        %1481 = vadd.xlane.f32.xlu0 %v1480
        %v1482 = vpop.xlane.xlu0 %1481
        %1483 = vrot.lane.b32.xlu0 %v627, 104
        %v1484 = vpop.permute.xlu0 %1483
        %v1487 = vsel %vm640, %v1479, 0
        %1489 = vmatprep.subr.mxu0 0.0
        %1490 = vmatpush1.msra.mxu0 %v1484
        %1491 = vmatprep.subr.mxu0 0.0
        %1492 = vmatpush1.msra.mxu0 0.0
        %1493 = vmatprep.subr.mxu0 0.0
        %1494 = vmatpush1.msra.mxu0 0.0
        %1495 = vmatprep.subr.mxu0 0.0
        %1496 = vmatpush1.msra.mxu0 0.0
        %1497 = vmatprep.subr.mxu0 0.0
        %1498 = vmatpush1.msra.mxu0 0.0
        %1499 = vmatprep.subr.mxu0 0.0
        %1500 = vmatpush1.msra.mxu0 0.0
        %1501 = vmatprep.subr.mxu0 0.0
        %1502 = vmatpush1.msra.mxu0 0.0
        %1503 = vmatprep.subr.mxu0 0.0
        %1504 = vmatpush1.msra.mxu0 0.0
        %1505 = vmatprep.subr.mxu0 0.0
        %1506 = vmatpush1.msra.mxu0 0.0
        %1507 = vmatprep.subr.mxu0 0.0
        %1508 = vmatpush1.msra.mxu0 0.0
        %1509 = vmatprep.subr.mxu0 0.0
        %1510 = vmatpush1.msra.mxu0 0.0
        %1511 = vmatprep.subr.mxu0 0.0
        %1512 = vmatpush1.msra.mxu0 0.0
        %1513 = vmatprep.subr.mxu0 0.0
        %1514 = vmatpush1.msra.mxu0 0.0
        %1515 = vmatprep.subr.mxu0 0.0
        %1516 = vmatpush1.msra.mxu0 0.0
        %1517 = vmatprep.subr.mxu0 0.0
        %1518 = vmatpush1.msra.mxu0 0.0
        %1519 = vmatprep.subr.mxu0 0.0
        %1520 = vmatpush1.msra.mxu0 0.0
        %1521 = vmatprep.subr.mxu0 0.0
        %1522 = vmatpush1.msra.mxu0 0.0
        %1523 = vmatprep.subr.mxu0 0.0
        %1524 = vmatpush1.msra.mxu0 0.0
        %1525 = vmatprep.subr.mxu0 0.0
        %1526 = vmatpush1.msra.mxu0 0.0
        %1527 = vmatprep.subr.mxu0 0.0
        %1528 = vmatpush1.msra.mxu0 0.0
        %1529 = vmatprep.subr.mxu0 0.0
        %1530 = vmatpush1.msra.mxu0 0.0
        %1531 = vmatprep.subr.mxu0 0.0
        %1532 = vmatpush1.msra.mxu0 0.0
        %1533 = vmatprep.subr.mxu0 0.0
        %1534 = vmatpush1.msra.mxu0 0.0
        %1535 = vmatprep.subr.mxu0 0.0
        %1536 = vmatpush1.msra.mxu0 0.0
        %1537 = vmatprep.subr.mxu0 0.0
        %1538 = vmatpush1.msra.mxu0 0.0
        %1539 = vmatprep.subr.mxu0 0.0
        %1540 = vmatpush1.msra.mxu0 0.0
        %1541 = vmatprep.subr.mxu0 0.0
        %1542 = vmatpush1.msra.mxu0 0.0
        %1543 = vmatprep.subr.mxu0 0.0
        %1544 = vmatpush1.msra.mxu0 0.0
        %1545 = vmatprep.subr.mxu0 0.0
        %1546 = vmatpush1.msra.mxu0 0.0
        %1547 = vmatprep.subr.mxu0 0.0
        %1548 = vmatpush1.msra.mxu0 0.0
        %1549 = vmatprep.subr.mxu0 0.0
        %1550 = vmatpush1.msra.mxu0 0.0
        %1551 = vmatprep.subr.mxu0 0.0
        %1552 = vmatpush1.msra.mxu0 0.0
        %1553 = vmatprep.mubr.f32.mxu0 0.0
        %1554 = vmatmul.mubr.f32.gmra.mrb[0].mxu0 %v1487
        %v1555 = vpop.f32.mrb[0].mxu0
        %v1556 = vadd.f32 0.0, %v1555
        %v1557 = vpop.f32.mrb[0].mxu0
        %1558 = vdwg.mxu0
        %v1559 = vrcp.pop %v1482
        %v1560 = vmul.f32 %v1556, %v1559
        %1561 = vrot.lane.b32.xlu0 %v636, 104
        %v1562 = vpop.permute.xlu0 %1561
        %1563 = vrot.lane.b32.xlu0 %v637, 104
        %v1564 = vpop.permute.xlu0 %1563
        %1565 = vrot.lane.b32.xlu0 %v638, 104
        %v1566 = vpop.permute.xlu0 %1565
        %1567 = vrot.lane.b32.xlu0 %v639, 104
        %v1568 = vpop.permute.xlu0 %1567
        %v1570 = vsel %vm640, %v1560, 0
        %v1572 = vsel %vm640, %v1562, 0
        %v1574 = vsel %vm640, %v1564, 0
        %v1576 = vsel %vm640, %v1566, 0
        %v1578 = vsel %vm640, %v1568, 0
        %1580 = vmatprep.subr.mxu0 0.0
        %1581 = vmatpush1.xpose.msra.mxu0 %v1572
        %1582 = vmatprep.subr.mxu0 0.0
        %1583 = vmatpush1.xpose.msra.mxu0 %v1574
        %1584 = vmatprep.subr.mxu0 0.0
        %1585 = vmatpush1.xpose.msra.mxu0 %v1576
        %1586 = vmatprep.subr.mxu0 0.0
        %1587 = vmatpush1.xpose.msra.mxu0 %v1578
        %1588 = vmatprep.subr.mxu0 0.0
        %1589 = vmatpush1.xpose.msra.mxu0 0.0
        %1590 = vmatprep.subr.mxu0 0.0
        %1591 = vmatpush1.xpose.msra.mxu0 0.0
        %1592 = vmatprep.subr.mxu0 0.0
        %1593 = vmatpush1.xpose.msra.mxu0 0.0
        %1594 = vmatprep.subr.mxu0 0.0
        %1595 = vmatpush1.xpose.msra.mxu0 0.0
        %1596 = vmatprep.subr.mxu0 0.0
        %1597 = vmatpush1.xpose.msra.mxu0 0.0
        %1598 = vmatprep.subr.mxu0 0.0
        %1599 = vmatpush1.xpose.msra.mxu0 0.0
        %1600 = vmatprep.subr.mxu0 0.0
        %1601 = vmatpush1.xpose.msra.mxu0 0.0
        %1602 = vmatprep.subr.mxu0 0.0
        %1603 = vmatpush1.xpose.msra.mxu0 0.0
        %1604 = vmatprep.subr.mxu0 0.0
        %1605 = vmatpush1.xpose.msra.mxu0 0.0
        %1606 = vmatprep.subr.mxu0 0.0
        %1607 = vmatpush1.xpose.msra.mxu0 0.0
        %1608 = vmatprep.subr.mxu0 0.0
        %1609 = vmatpush1.xpose.msra.mxu0 0.0
        %1610 = vmatprep.subr.mxu0 0.0
        %1611 = vmatpush1.xpose.msra.mxu0 0.0
        %1612 = vmatprep.subr.mxu0 0.0
        %1613 = vmatpush1.xpose.msra.mxu0 0.0
        %1614 = vmatprep.subr.mxu0 0.0
        %1615 = vmatpush1.xpose.msra.mxu0 0.0
        %1616 = vmatprep.subr.mxu0 0.0
        %1617 = vmatpush1.xpose.msra.mxu0 0.0
        %1618 = vmatprep.subr.mxu0 0.0
        %1619 = vmatpush1.xpose.msra.mxu0 0.0
        %1620 = vmatprep.subr.mxu0 0.0
        %1621 = vmatpush1.xpose.msra.mxu0 0.0
        %1622 = vmatprep.subr.mxu0 0.0
        %1623 = vmatpush1.xpose.msra.mxu0 0.0
        %1624 = vmatprep.subr.mxu0 0.0
        %1625 = vmatpush1.xpose.msra.mxu0 0.0
        %1626 = vmatprep.subr.mxu0 0.0
        %1627 = vmatpush1.xpose.msra.mxu0 0.0
        %1628 = vmatprep.subr.mxu0 0.0
        %1629 = vmatpush1.xpose.msra.mxu0 0.0
        %1630 = vmatprep.subr.mxu0 0.0
        %1631 = vmatpush1.xpose.msra.mxu0 0.0
        %1632 = vmatprep.subr.mxu0 0.0
        %1633 = vmatpush1.xpose.msra.mxu0 0.0
        %1634 = vmatprep.subr.mxu0 0.0
        %1635 = vmatpush1.xpose.msra.mxu0 0.0
        %1636 = vmatprep.subr.mxu0 0.0
        %1637 = vmatpush1.xpose.msra.mxu0 0.0
        %1638 = vmatprep.subr.mxu0 0.0
        %1639 = vmatpush1.xpose.msra.mxu0 0.0
        %1640 = vmatprep.subr.mxu0 0.0
        %1641 = vmatpush1.xpose.msra.mxu0 0.0
        %1642 = vmatprep.subr.mxu0 0.0
        %1643 = vmatpush1.xpose.msra.mxu0 0.0
        %1644 = vmatprep.mubr.f32.mxu0 0.0
        %1645 = vmatmul.mubr.f32.gmra.mrb[0].mxu0 %v1570
        %v1646 = vpop.f32.mrb[0].mxu0
        %v1647 = vadd.f32 0.0, %v1646
        %v1648 = vpop.f32.mrb[0].mxu0
        %1649 = vdwg.mxu0
        %v1650 = vadd.f32 %v1395, %v1647
        %1651 = vst.msk [vmem:[%s361] sm:$0xff] %vm368, %v1650
        %s1652 = sand.u32 %s172, 1
        %s1653 = scalar_lea.sflag [#allocation4], %s1652
        %s1654 = sand.u32 %s172, 1
        %s1655 = smul.addr %s1654, 8
        %s1656 = scalar_lea.vmem [#allocation13], %s1655
        // Predicated region
        $region69: #{multi_head_cross_attention.1} parent=43 // pred_check
          %p1657 = pneg %p182
        $region70: #{multi_head_cross_attention.1} parent=43 // pred_check_branch
          %1659 = sbr.rel (%p1657) target = $region72
        $region71: #{multi_head_cross_attention.1} parent=43 // pred_region
          %s1661 = ssub.s32 128, 128
          %1662 = vsyncadd %s1653, %s1661
          %s1663 = smul.addr %s28, 128
          %s1664 = scalar_lea.hbm %s6, %s1663
          %s1666 = sshll.u32 %s1656, 4
          %s1667 = int_to_ptr.vmem [resolvable:$true] %s1666
          %1669 = dma.vmem_to_hbm [thread:$0]  %s1667, 128, %s1664, %s1653
        $region72: #{multi_head_cross_attention.1} parent=43 // pred_fallthru
          _
      $region44: #{multi_head_cross_attention.1} parent=5 // pred_fallthru
        _
      %p1670 = scmp.le.s32.totalorder 2, %s23
      // Predicated region
      $region73: #{multi_head_cross_attention.1} parent=5 // pred_check
        %p1671 = pneg %p1670
      $region74: #{multi_head_cross_attention.1} parent=5 // pred_check_branch
        %1673 = sbr.rel (%p1671) target = $region76
      $region75: #{multi_head_cross_attention.1} parent=5 // pred_region
        %s1674 = ssub.s32 %s23, 2
        // Predicated region
        $region77: #{multi_head_cross_attention.1} parent=75 // pred_check
          %p1675 = pneg %p188
        $region78: #{multi_head_cross_attention.1} parent=75 // pred_check_branch
          %1677 = sbr.rel (%p1675) target = $region80
        $region79: #{multi_head_cross_attention.1} parent=75 // pred_region
          %s1678 = sand.u32 %s173, 1
          %s1679 = scalar_lea.sflag [#allocation4], %s1678
          %s1680 = sand.u32 %s173, 1
          %s1681 = smul.addr %s1680, 8
          %s1682 = scalar_lea.vmem [#allocation13], %s1681
          %1683 = dma.done %s1679, 128
        $region80: #{multi_head_cross_attention.1} parent=75 // pred_fallthru
          _
      $region76: #{multi_head_cross_attention.1} parent=5 // pred_fallthru
        _
    $region6: #{multi_head_cross_attention.1} parent=1 // loop_footer
      %s27 = sadd.s32 1, %s23
    $region7: #{multi_head_cross_attention.1} parent=1 // loop_footer_branch
      %22 = sbr.rel target = $region3
    $region8: #{multi_head_cross_attention.1} parent=1 // loop_exit
      _
    %1684 = vsyncpa [#allocation3], 1
    %s1685 = scalar_lea.sflag [#allocation3], 1
    %1686 = vsyncpa %s1685, 1
    %1687 = vsyncpa [#allocation6], 1
    %s1688 = scalar_lea.sflag [#allocation6], 1
    %1689 = vsyncpa %s1688, 1
    %1690 = vsyncpa [#allocation9], 1
    %1691 = vsyncpa [#allocation12], 1
    %1692 = vsyncpa [#allocation4], 1
    %s1693 = scalar_lea.sflag [#allocation4], 1
    %1694 = vsyncpa %s1693, 1

</llo_original>
